<compile_context>
chip_gen: v7x
topology: tpu7x:2x2x1
jax: 0.10.0
libtpu: 0.0.40
codegen_flags: <defaults>
</compile_context>

<pallas_src>
import functools

import jax
import jax.numpy as jnp
from jax import lax
from jax.experimental import pallas as pl
from jax.experimental.pallas import tpu as pltpu


def _round_up(x, m):
    return ((x + m - 1) // m) * m


def _lstm_block_kernel(len_ref, emb_ref, wih_ref, whh_ref, b_ref,
                       fcw_ref, fcb_ref, out_ref,
                       h_s, c_s, gx_s, *, gate_w, block_t, dense_gates):
    # Grid: (batch_blocks, time_blocks); time is innermost / "arbitrary".
    # len_ref : (Bt, 1)            int32  per-example lengths
    # emb_ref : (Tt, Bt, E)        bf16   embedded tokens (straight from (Tp,Bp,E))
    # wih_ref : (E, Gw)            bf16   input->gates
    # whh_ref : (Hs, Gw)           bf16   hidden->gates
    # b_ref   : (1, Gw)            f32    b_ih + b_hh (padded lanes are 0)
    # fcw_ref : (Hs, Op)           f32    fc weight
    # fcb_ref : (1, Op)            f32    fc bias
    # out_ref : (Bt, Op)           f32    sigmoid(fc(hidden[-1]))
    # h_s,c_s : (Bt, Hs)           f32    carried LSTM state (VMEM scratch)
    # gx_s    : (Tt*Bt, Gw)        f32    per-block input projection
    t_blk = pl.program_id(1)
    n_t = pl.num_programs(1)
    Hs = gate_w
    Tt = block_t
    Bt = h_s.shape[0]
    E = emb_ref.shape[-1]

    # ---- reset carried state at the start of every batch block's time sweep
    @pl.when(t_blk == 0)
    def _():
        h_s[...] = jnp.zeros_like(h_s)
        c_s[...] = jnp.zeros_like(c_s)

    # ---- input projection for the whole time block: one MXU-shaped matmul.
    # (Tt, Bt, E) -> (Tt*Bt, E) is a leading-dim merge (Bt % 8 == 0): free.
    emb2d = emb_ref[...].reshape(Tt * Bt, E)                     # bf16
    gx_s[...] = jnp.dot(emb2d, wih_ref[...],
                        preferred_element_type=jnp.float32) + b_ref[...]

    # ---- hoist loop-invariant loads out of the recurrence
    whh = whh_ref[...]                                           # (Hs, Gw) bf16
    lens = len_ref[...]                                          # (Bt, 1) int32
    t0 = t_blk * Tt

    def step(lt, carry):
        h, c = carry
        row0 = pl.multiple_of(lt * Bt, Bt)                       # aligned slab load
        gates = gx_s[pl.ds(row0, Bt), :] + jnp.dot(
            h.astype(whh.dtype), whh, preferred_element_type=jnp.float32)
        if dense_gates:
            # H < 128: gates packed densely as [i|f|g|o]; one full-width
            # sigmoid (via tanh) + one full-width tanh cover all four gates.
            sg = 0.5 * (jnp.tanh(0.5 * gates) + 1.0)
            th = jnp.tanh(gates)
            i, f = sg[:, 0:Hs], sg[:, Hs:2 * Hs]
            g = th[:, 2 * Hs:3 * Hs]
            o = sg[:, 3 * Hs:4 * Hs]
        else:
            # H multiple of 128: per-gate lane-aligned slices.
            i = 0.5 * (jnp.tanh(0.5 * gates[:, 0:Hs]) + 1.0)
            f = 0.5 * (jnp.tanh(0.5 * gates[:, Hs:2 * Hs]) + 1.0)
            g = jnp.tanh(gates[:, 2 * Hs:3 * Hs])
            o = 0.5 * (jnp.tanh(0.5 * gates[:, 3 * Hs:4 * Hs]) + 1.0)
        c_new = f * c + i * g
        h_new = o * jnp.tanh(c_new)
        # pack_padded_sequence semantics: freeze state once t >= lengths[b].
        mask = lens > (t0 + lt)                                  # (Bt, 1)
        return jnp.where(mask, h_new, h), jnp.where(mask, c_new, c)

    h, c = lax.fori_loop(0, Tt, step, (h_s[...], c_s[...]),
                         unroll=max(1, min(8, Tt)))
    h_s[...] = h
    c_s[...] = c

    # ---- final FC + sigmoid once per batch block (lane-dense Op output)
    @pl.when(t_blk == n_t - 1)
    def _():
        logits = jnp.dot(h, fcw_ref[...],
                         preferred_element_type=jnp.float32) + fcb_ref[...]
        out_ref[...] = jax.nn.sigmoid(logits)


def rnn_classifier_forward(text, lengths, params, *, block_t=None):
    """text: (T, B) int32 token ids; lengths: (B,) int; returns (B, O) float32."""
    emb_table = params["embedding"]                              # (V, E)
    E = emb_table.shape[1]
    H = params["w_hh"].shape[1]
    O = params["fc_w"].shape[0]
    T, B = text.shape

    dense = H < 128
    Hs = H if dense else _round_up(H, 128)     # per-gate width / state width
    Gw = _round_up(4 * Hs, 128)                # total gate lanes (== 4*Hs if aligned)
    Op = _round_up(O, 128)                     # lane-dense output store
    Bt = min(_round_up(B, 8), 256)             # batch tile (MXU rows)
    Bp = _round_up(B, Bt)
    nbb = Bp // Bt

    # --- VMEM-aware sizing (weights, double-buffered emb/out blocks, h/c, gx)
    vmem_cap = 64 << 20                        # conservative default (v7x per-TC)
    try:
        info = pltpu.get_tpu_info()
        vmem_cap = int(getattr(info, "vmem_capacity_bytes", vmem_cap))
    except Exception:
        pass
    vmem_limit = int(min(vmem_cap - (4 << 20), 100 << 20))
    fixed = (2 * (E * Gw * 2 + Hs * Gw * 2 + Gw * 4 + Hs * Op * 4 + Op * 4
                  + Bt * Op * 4 + Bt * 4)
             + 2 * Bt * Hs * 4)
    per_t = 2 * Bt * E * 2 + Bt * Gw * 4       # 2x bf16 emb buffers + f32 gate scratch
    if block_t is None:
        budget = int(vmem_limit * 0.75)
        block_t = int(max(1, min(T, (budget - fixed) // max(1, per_t), 512)))
    Tp = _round_up(T, block_t)

    # --- embedding gather (plain-JAX glue); NO wrapper-side transpose.
    embedded = emb_table[text].astype(jnp.bfloat16)                   # (T, B, E)
    embedded = jnp.pad(embedded, ((0, Tp - T), (0, Bp - B), (0, 0)))  # (Tp,Bp,E)

    f32, bf16 = jnp.float32, jnp.bfloat16
    if dense:
        # Gates packed densely along lanes [i|f|g|o] (PyTorch order), each H wide.
        wih_t = jnp.pad(params["w_ih"].T, ((0, 0), (0, Gw - 4 * H))).astype(bf16)
        whh_t = jnp.pad(params["w_hh"].T, ((0, 0), (0, Gw - 4 * H))).astype(bf16)
        bias = jnp.pad(params["b_ih"] + params["b_hh"], (0, Gw - 4 * H))
        bias = bias.reshape(1, Gw).astype(f32)
    else:
        # Each gate padded to Hs lanes so gate slices are 128-lane aligned.
        def pack(w, d_in, d_pad):
            w4 = w.reshape(4, H, d_in)
            w4 = jnp.pad(w4, ((0, 0), (0, Hs - H), (0, d_pad - d_in)))
            return jnp.transpose(w4, (2, 0, 1)).reshape(d_pad, 4 * Hs)
        wih_t = pack(params["w_ih"], E, E).astype(bf16)
        whh_t = pack(params["w_hh"], H, Hs).astype(bf16)
        bias = jnp.pad((params["b_ih"] + params["b_hh"]).reshape(4, H),
                       ((0, 0), (0, Hs - H))).reshape(1, 4 * Hs).astype(f32)

    fcw_t = jnp.pad(params["fc_w"].T, ((0, Hs - H), (0, Op - O))).astype(f32)
    fcb = jnp.pad(params["fc_b"], (0, Op - O)).reshape(1, Op).astype(f32)
    lens = jnp.pad(lengths.astype(jnp.int32), (0, Bp - B)).reshape(Bp, 1)

    grid = (nbb, Tp // block_t)
    kernel = functools.partial(_lstm_block_kernel, gate_w=Hs, block_t=block_t,
                               dense_gates=dense)

    out = pl.pallas_call(
        kernel,
        out_shape=jax.ShapeDtypeStruct((Bp, Op), jnp.float32),
        grid=grid,
        in_specs=[
            pl.BlockSpec((Bt, 1), lambda b, t: (b, 0)),                 # lengths
            pl.BlockSpec((block_t, Bt, E), lambda b, t: (t, b, 0)),     # embedded
            pl.BlockSpec((E, Gw), lambda b, t: (0, 0)),                 # W_ih^T
            pl.BlockSpec((Hs, Gw), lambda b, t: (0, 0)),                # W_hh^T
            pl.BlockSpec((1, Gw), lambda b, t: (0, 0)),                 # bias
            pl.BlockSpec((Hs, Op), lambda b, t: (0, 0)),                # fc W^T
            pl.BlockSpec((1, Op), lambda b, t: (0, 0)),                 # fc b
        ],
        out_specs=pl.BlockSpec((Bt, Op), lambda b, t: (b, 0)),
        scratch_shapes=[
            pltpu.VMEM((Bt, Hs), jnp.float32),                 # h
            pltpu.VMEM((Bt, Hs), jnp.float32),                 # c
            pltpu.VMEM((block_t * Bt, Gw), jnp.float32),       # per-block gates_x
        ],
        compiler_params=pltpu.CompilerParams(
            dimension_semantics=("parallel", "arbitrary"),
            vmem_limit_bytes=vmem_limit,
        ),
    )(lens, embedded, wih_t, whh_t, bias, fcw_t, fcb)
    return out[:B, :O]


def _reference_forward(text, lengths, params):
    """Pure-JAX f32 reference matching the PyTorch forward."""
    emb = params["embedding"][text].astype(jnp.float32)    # (T, B, E)
    T, B, _ = emb.shape
    H = params["w_hh"].shape[1]
    wih, whh = params["w_ih"], params["w_hh"]
    b = params["b_ih"] + params["b_hh"]

    def step(carry, xs):
        h, c = carry
        x, t = xs
        gates = x @ wih.T + h @ whh.T + b
        i, f, g, o = jnp.split(gates, 4, axis=-1)
        i, f, o = jax.nn.sigmoid(i), jax.nn.sigmoid(f), jax.nn.sigmoid(o)
        g = jnp.tanh(g)
        c_new = f * c + i * g
        h_new = o * jnp.tanh(c_new)
        mask = (lengths > t)[:, None]
        return (jnp.where(mask, h_new, h), jnp.where(mask, c_new, c)), None

    h0 = jnp.zeros((B, H), jnp.float32)
    (h, _), _ = lax.scan(step, (h0, h0), (emb, jnp.arange(T)))
    return jax.nn.sigmoid(h @ params["fc_w"].T + params["fc_b"])


def init_params(key, vocab_size, embed_dim, hidden_dim, output_dim):
    ks = jax.random.split(key, 7)
    s = 1.0 / jnp.sqrt(hidden_dim)
    return {
        "embedding": jax.random.normal(ks[0], (vocab_size, embed_dim), jnp.float32),
        "w_ih": jax.random.uniform(ks[1], (4 * hidden_dim, embed_dim), jnp.float32, -s, s),
        "w_hh": jax.random.uniform(ks[2], (4 * hidden_dim, hidden_dim), jnp.float32, -s, s),
        "b_ih": jax.random.uniform(ks[3], (4 * hidden_dim,), jnp.float32, -s, s),
        "b_hh": jax.random.uniform(ks[4], (4 * hidden_dim,), jnp.float32, -s, s),
        "fc_w": jax.random.uniform(ks[5], (output_dim, hidden_dim), jnp.float32, -s, s),
        "fc_b": jax.random.uniform(ks[6], (output_dim,), jnp.float32, -s, s),
    }


if __name__ == "__main__":
    vocab_size, embed_dim, hidden_dim, output_dim = 50, 16, 32, 1
    seq_len, batch = 8, 2

    key = jax.random.PRNGKey(0)
    pkey, tkey = jax.random.split(key)
    params = init_params(pkey, vocab_size, embed_dim, hidden_dim, output_dim)

    text = jax.random.randint(tkey, (seq_len, batch), 0, vocab_size, jnp.int32)
    lengths = jnp.array([5, 8], dtype=jnp.int32)   # enforce_sorted=False: any order

    out = rnn_classifier_forward(text, lengths, params)
    jax.block_until_ready(out)
    assert out.shape == (batch, output_dim)

    ref = _reference_forward(text, lengths, params)
    assert jnp.allclose(out, ref, atol=5e-2), (out, ref)   # bf16-matmul tolerance

    print("KERNEL_OK")
</pallas_src>

<mosaic_0001>
module attributes {stable_mosaic.version = 11 : i64} {
  func.func @_lstm_block_kernel(%arg0: i32, %arg1: i32, %arg2: memref<8x1xi32, #tpu.memory_space<vmem>>, %arg3: memref<8x8x16xbf16, #tpu.memory_space<vmem>>, %arg4: memref<16x128xbf16, #tpu.memory_space<vmem>>, %arg5: memref<32x128xbf16, #tpu.memory_space<vmem>>, %arg6: memref<1x128xf32, #tpu.memory_space<vmem>>, %arg7: memref<32x128xf32, #tpu.memory_space<vmem>>, %arg8: memref<1x128xf32, #tpu.memory_space<vmem>>, %arg9: memref<8x128xf32, #tpu.memory_space<vmem>>, %arg10: memref<8x32xf32, #tpu.memory_space<vmem>>, %arg11: memref<8x32xf32, #tpu.memory_space<vmem>>, %arg12: memref<64x128xf32, #tpu.memory_space<vmem>>) attributes {dimension_semantics = [#tpu.dimension_semantics<parallel>, #tpu.dimension_semantics<arbitrary>], iteration_bounds = array<i64: 1, 1>, scalar_prefetch = 0 : i64, scratch_operands = 3 : i64, tpu.core_type = #tpu.core_type<tc>, window_params = [{transform_indices = @transform_0, window_bounds = array<i64: 8, 1>}, {transform_indices = @transform_1, window_bounds = array<i64: 8, 8, 16>}, {pipeline_mode = #tpu.pipeline_mode<synchronous>, transform_indices = @transform_2, window_bounds = array<i64: 16, 128>}, {pipeline_mode = #tpu.pipeline_mode<synchronous>, transform_indices = @transform_3, window_bounds = array<i64: 32, 128>}, {pipeline_mode = #tpu.pipeline_mode<synchronous>, transform_indices = @transform_4, window_bounds = array<i64: 1, 128>}, {pipeline_mode = #tpu.pipeline_mode<synchronous>, transform_indices = @transform_5, window_bounds = array<i64: 32, 128>}, {pipeline_mode = #tpu.pipeline_mode<synchronous>, transform_indices = @transform_6, window_bounds = array<i64: 1, 128>}, {transform_indices = @transform_7, window_bounds = array<i64: 8, 128>}]} {
    %c0_i32 = arith.constant 0 : i32
    %0 = arith.cmpi eq, %arg1, %c0_i32 : i32
    %1 = arith.extui %0 : i1 to i32
    %c0_i32_0 = arith.constant 0 : i32
    %2 = arith.cmpi ne, %1, %c0_i32_0 : i32
    scf.if %2 {
      %cst_73 = arith.constant 0.000000e+00 : f32
      %285 = vector.broadcast %cst_73 : f32 to vector<8x32xf32>
      %c0_74 = arith.constant 0 : index
      %c0_75 = arith.constant 0 : index
      %286 = vector.load %arg10[%c0_74, %c0_75] : memref<8x32xf32, #tpu.memory_space<vmem>>, vector<8x32xf32>
      tpu.vector_store %arg10[%c0_74, %c0_75], %285 {strides = array<i32>} : memref<8x32xf32, #tpu.memory_space<vmem>>, vector<8x32xf32>,
      %cst_76 = arith.constant 0.000000e+00 : f32
      %287 = vector.broadcast %cst_76 : f32 to vector<8x32xf32>
      %c0_77 = arith.constant 0 : index
      %c0_78 = arith.constant 0 : index
      %288 = vector.load %arg11[%c0_77, %c0_78] : memref<8x32xf32, #tpu.memory_space<vmem>>, vector<8x32xf32>
      tpu.vector_store %arg11[%c0_77, %c0_78], %287 {strides = array<i32>} : memref<8x32xf32, #tpu.memory_space<vmem>>, vector<8x32xf32>,
    } else {
    }
    %c0 = arith.constant 0 : index
    %c0_1 = arith.constant 0 : index
    %c0_2 = arith.constant 0 : index
    %3 = vector.load %arg3[%c0, %c0_1, %c0_2] : memref<8x8x16xbf16, #tpu.memory_space<vmem>>, vector<8x8x16xbf16>
    %4 = vector.shape_cast %3 : vector<8x8x16xbf16> to vector<64x16xbf16>
    %c0_3 = arith.constant 0 : index
    %c0_4 = arith.constant 0 : index
    %5 = vector.load %arg4[%c0_3, %c0_4] : memref<16x128xbf16, #tpu.memory_space<vmem>>, vector<16x128xbf16>
    %cst = arith.constant dense<0.000000e+00> : vector<64x128xf32>
    %6 = tpu.matmul %4, %5, %cst {dimension_numbers = #tpu.dot_dimension_numbers<[1], [0], [0], [1], [0, 0, 1, 1], [], []>} : vector<64x16xbf16>, vector<16x128xbf16>, vector<64x128xf32> -> vector<64x128xf32>
    %c0_5 = arith.constant 0 : index
    %c0_6 = arith.constant 0 : index
    %7 = vector.load %arg6[%c0_5, %c0_6] : memref<1x128xf32, #tpu.memory_space<vmem>>, vector<1x128xf32>
    %8 = vector.broadcast %7 : vector<1x128xf32> to vector<64x128xf32>
    %9 = arith.addf %6, %8 : vector<64x128xf32>
    %c0_7 = arith.constant 0 : index
    %c0_8 = arith.constant 0 : index
    %10 = vector.load %arg12[%c0_7, %c0_8] : memref<64x128xf32, #tpu.memory_space<vmem>>, vector<64x128xf32>
    tpu.vector_store %arg12[%c0_7, %c0_8], %9 {strides = array<i32>} : memref<64x128xf32, #tpu.memory_space<vmem>>, vector<64x128xf32>,
    %c0_9 = arith.constant 0 : index
    %c0_10 = arith.constant 0 : index
    %11 = vector.load %arg5[%c0_9, %c0_10] : memref<32x128xbf16, #tpu.memory_space<vmem>>, vector<32x128xbf16>
    %c0_11 = arith.constant 0 : index
    %c0_12 = arith.constant 0 : index
    %12 = vector.load %arg2[%c0_11, %c0_12] : memref<8x1xi32, #tpu.memory_space<vmem>>, vector<8x1xi32>
    %c8_i32 = arith.constant 8 : i32
    %13 = arith.muli %arg1, %c8_i32 : i32
    %c0_13 = arith.constant 0 : index
    %c0_14 = arith.constant 0 : index
    %14 = vector.load %arg10[%c0_13, %c0_14] : memref<8x32xf32, #tpu.memory_space<vmem>>, vector<8x32xf32>
    %c0_15 = arith.constant 0 : index
    %c0_16 = arith.constant 0 : index
    %15 = vector.load %arg11[%c0_15, %c0_16] : memref<8x32xf32, #tpu.memory_space<vmem>>, vector<8x32xf32>
    %c0_i32_17 = arith.constant 0 : i32
    %c8_i32_18 = arith.constant 8 : i32
    %16 = arith.muli %c0_i32_17, %c8_i32_18 : i32
    %17 = tpu.assume_multiple %16, 8 : i32
    %18 = arith.index_cast %17 : i32 to index
    %c0_19 = arith.constant 0 : index
    %19 = vector.load %arg12[%18, %c0_19] : memref<64x128xf32, #tpu.memory_space<vmem>>, vector<8x128xf32>
    %20 = arith.truncf %14 : vector<8x32xf32> to vector<8x32xbf16>
    %cst_20 = arith.constant dense<0.000000e+00> : vector<8x128xf32>
    %21 = tpu.matmul %20, %11, %cst_20 {dimension_numbers = #tpu.dot_dimension_numbers<[1], [0], [0], [1], [0, 0, 1, 1], [], []>} : vector<8x32xbf16>, vector<32x128xbf16>, vector<8x128xf32> -> vector<8x128xf32>
    %22 = arith.addf %19, %21 : vector<8x128xf32>
    %cst_21 = arith.constant 5.000000e-01 : f32
    %23 = vector.broadcast %cst_21 : f32 to vector<8x128xf32>
    %24 = arith.mulf %23, %22 : vector<8x128xf32>
    %25 = math.tanh %24 : vector<8x128xf32>
    %cst_22 = arith.constant 1.000000e+00 : f32
    %26 = vector.broadcast %cst_22 : f32 to vector<8x128xf32>
    %27 = arith.addf %25, %26 : vector<8x128xf32>
    %cst_23 = arith.constant 5.000000e-01 : f32
    %28 = vector.broadcast %cst_23 : f32 to vector<8x128xf32>
    %29 = arith.mulf %28, %27 : vector<8x128xf32>
    %30 = math.tanh %22 : vector<8x128xf32>
    %31 = vector.extract_strided_slice %29 {offsets = [0, 0], sizes = [8, 32], strides = [1, 1]} : vector<8x128xf32> to vector<8x32xf32>
    %32 = vector.extract_strided_slice %29 {offsets = [0, 32], sizes = [8, 32], strides = [1, 1]} : vector<8x128xf32> to vector<8x32xf32>
    %33 = vector.extract_strided_slice %30 {offsets = [0, 64], sizes = [8, 32], strides = [1, 1]} : vector<8x128xf32> to vector<8x32xf32>
    %34 = vector.extract_strided_slice %29 {offsets = [0, 96], sizes = [8, 32], strides = [1, 1]} : vector<8x128xf32> to vector<8x32xf32>
    %35 = arith.mulf %32, %15 : vector<8x32xf32>
    %36 = arith.mulf %31, %33 : vector<8x32xf32>
    %37 = arith.addf %35, %36 : vector<8x32xf32>
    %38 = math.tanh %37 : vector<8x32xf32>
    %39 = arith.mulf %34, %38 : vector<8x32xf32>
    %40 = arith.addi %13, %c0_i32_17 : i32
    %41 = vector.broadcast %40 : i32 to vector<8x1xi32>
    %42 = arith.cmpi sgt, %12, %41 : vector<8x1xi32>
    %43 = vector.shape_cast %42 : vector<8x1xi1> to vector<8x1xi1>
    %44 = vector.broadcast %43 : vector<8x1xi1> to vector<8x32xi1>
    %45 = arith.select %44, %39, %14 : vector<8x32xi1>, vector<8x32xf32>
    %46 = vector.shape_cast %42 : vector<8x1xi1> to vector<8x1xi1>
    %47 = vector.broadcast %46 : vector<8x1xi1> to vector<8x32xi1>
    %48 = arith.select %47, %37, %15 : vector<8x32xi1>, vector<8x32xf32>
    %c1_i32 = arith.constant 1 : i32
    %c8_i32_24 = arith.constant 8 : i32
    %49 = arith.muli %c1_i32, %c8_i32_24 : i32
    %50 = tpu.assume_multiple %49, 8 : i32
    %51 = arith.index_cast %50 : i32 to index
    %c0_25 = arith.constant 0 : index
    %52 = vector.load %arg12[%51, %c0_25] : memref<64x128xf32, #tpu.memory_space<vmem>>, vector<8x128xf32>
    %53 = arith.truncf %45 : vector<8x32xf32> to vector<8x32xbf16>
    %cst_26 = arith.constant dense<0.000000e+00> : vector<8x128xf32>
    %54 = tpu.matmul %53, %11, %cst_26 {dimension_numbers = #tpu.dot_dimension_numbers<[1], [0], [0], [1], [0, 0, 1, 1], [], []>} : vector<8x32xbf16>, vector<32x128xbf16>, vector<8x128xf32> -> vector<8x128xf32>
    %55 = arith.addf %52, %54 : vector<8x128xf32>
    %cst_27 = arith.constant 5.000000e-01 : f32
    %56 = vector.broadcast %cst_27 : f32 to vector<8x128xf32>
    %57 = arith.mulf %56, %55 : vector<8x128xf32>
    %58 = math.tanh %57 : vector<8x128xf32>
    %cst_28 = arith.constant 1.000000e+00 : f32
    %59 = vector.broadcast %cst_28 : f32 to vector<8x128xf32>
    %60 = arith.addf %58, %59 : vector<8x128xf32>
    %cst_29 = arith.constant 5.000000e-01 : f32
    %61 = vector.broadcast %cst_29 : f32 to vector<8x128xf32>
    %62 = arith.mulf %61, %60 : vector<8x128xf32>
    %63 = math.tanh %55 : vector<8x128xf32>
    %64 = vector.extract_strided_slice %62 {offsets = [0, 0], sizes = [8, 32], strides = [1, 1]} : vector<8x128xf32> to vector<8x32xf32>
    %65 = vector.extract_strided_slice %62 {offsets = [0, 32], sizes = [8, 32], strides = [1, 1]} : vector<8x128xf32> to vector<8x32xf32>
    %66 = vector.extract_strided_slice %63 {offsets = [0, 64], sizes = [8, 32], strides = [1, 1]} : vector<8x128xf32> to vector<8x32xf32>
    %67 = vector.extract_strided_slice %62 {offsets = [0, 96], sizes = [8, 32], strides = [1, 1]} : vector<8x128xf32> to vector<8x32xf32>
    %68 = arith.mulf %65, %48 : vector<8x32xf32>
    %69 = arith.mulf %64, %66 : vector<8x32xf32>
    %70 = arith.addf %68, %69 : vector<8x32xf32>
    %71 = math.tanh %70 : vector<8x32xf32>
    %72 = arith.mulf %67, %71 : vector<8x32xf32>
    %73 = arith.addi %13, %c1_i32 : i32
    %74 = vector.broadcast %73 : i32 to vector<8x1xi32>
    %75 = arith.cmpi sgt, %12, %74 : vector<8x1xi32>
    %76 = vector.shape_cast %75 : vector<8x1xi1> to vector<8x1xi1>
    %77 = vector.broadcast %76 : vector<8x1xi1> to vector<8x32xi1>
    %78 = arith.select %77, %72, %45 : vector<8x32xi1>, vector<8x32xf32>
    %79 = vector.shape_cast %75 : vector<8x1xi1> to vector<8x1xi1>
    %80 = vector.broadcast %79 : vector<8x1xi1> to vector<8x32xi1>
    %81 = arith.select %80, %70, %48 : vector<8x32xi1>, vector<8x32xf32>
    %c2_i32 = arith.constant 2 : i32
    %c8_i32_30 = arith.constant 8 : i32
    %82 = arith.muli %c2_i32, %c8_i32_30 : i32
    %83 = tpu.assume_multiple %82, 8 : i32
    %84 = arith.index_cast %83 : i32 to index
    %c0_31 = arith.constant 0 : index
    %85 = vector.load %arg12[%84, %c0_31] : memref<64x128xf32, #tpu.memory_space<vmem>>, vector<8x128xf32>
    %86 = arith.truncf %78 : vector<8x32xf32> to vector<8x32xbf16>
    %cst_32 = arith.constant dense<0.000000e+00> : vector<8x128xf32>
    %87 = tpu.matmul %86, %11, %cst_32 {dimension_numbers = #tpu.dot_dimension_numbers<[1], [0], [0], [1], [0, 0, 1, 1], [], []>} : vector<8x32xbf16>, vector<32x128xbf16>, vector<8x128xf32> -> vector<8x128xf32>
    %88 = arith.addf %85, %87 : vector<8x128xf32>
    %cst_33 = arith.constant 5.000000e-01 : f32
    %89 = vector.broadcast %cst_33 : f32 to vector<8x128xf32>
    %90 = arith.mulf %89, %88 : vector<8x128xf32>
    %91 = math.tanh %90 : vector<8x128xf32>
    %cst_34 = arith.constant 1.000000e+00 : f32
    %92 = vector.broadcast %cst_34 : f32 to vector<8x128xf32>
    %93 = arith.addf %91, %92 : vector<8x128xf32>
    %cst_35 = arith.constant 5.000000e-01 : f32
    %94 = vector.broadcast %cst_35 : f32 to vector<8x128xf32>
    %95 = arith.mulf %94, %93 : vector<8x128xf32>
    %96 = math.tanh %88 : vector<8x128xf32>
    %97 = vector.extract_strided_slice %95 {offsets = [0, 0], sizes = [8, 32], strides = [1, 1]} : vector<8x128xf32> to vector<8x32xf32>
    %98 = vector.extract_strided_slice %95 {offsets = [0, 32], sizes = [8, 32], strides = [1, 1]} : vector<8x128xf32> to vector<8x32xf32>
    %99 = vector.extract_strided_slice %96 {offsets = [0, 64], sizes = [8, 32], strides = [1, 1]} : vector<8x128xf32> to vector<8x32xf32>
    %100 = vector.extract_strided_slice %95 {offsets = [0, 96], sizes = [8, 32], strides = [1, 1]} : vector<8x128xf32> to vector<8x32xf32>
    %101 = arith.mulf %98, %81 : vector<8x32xf32>
    %102 = arith.mulf %97, %99 : vector<8x32xf32>
    %103 = arith.addf %101, %102 : vector<8x32xf32>
    %104 = math.tanh %103 : vector<8x32xf32>
    %105 = arith.mulf %100, %104 : vector<8x32xf32>
    %106 = arith.addi %13, %c2_i32 : i32
    %107 = vector.broadcast %106 : i32 to vector<8x1xi32>
    %108 = arith.cmpi sgt, %12, %107 : vector<8x1xi32>
    %109 = vector.shape_cast %108 : vector<8x1xi1> to vector<8x1xi1>
    %110 = vector.broadcast %109 : vector<8x1xi1> to vector<8x32xi1>
    %111 = arith.select %110, %105, %78 : vector<8x32xi1>, vector<8x32xf32>
    %112 = vector.shape_cast %108 : vector<8x1xi1> to vector<8x1xi1>
    %113 = vector.broadcast %112 : vector<8x1xi1> to vector<8x32xi1>
    %114 = arith.select %113, %103, %81 : vector<8x32xi1>, vector<8x32xf32>
    %c3_i32 = arith.constant 3 : i32
    %c8_i32_36 = arith.constant 8 : i32
    %115 = arith.muli %c3_i32, %c8_i32_36 : i32
    %116 = tpu.assume_multiple %115, 8 : i32
    %117 = arith.index_cast %116 : i32 to index
    %c0_37 = arith.constant 0 : index
    %118 = vector.load %arg12[%117, %c0_37] : memref<64x128xf32, #tpu.memory_space<vmem>>, vector<8x128xf32>
    %119 = arith.truncf %111 : vector<8x32xf32> to vector<8x32xbf16>
    %cst_38 = arith.constant dense<0.000000e+00> : vector<8x128xf32>
    %120 = tpu.matmul %119, %11, %cst_38 {dimension_numbers = #tpu.dot_dimension_numbers<[1], [0], [0], [1], [0, 0, 1, 1], [], []>} : vector<8x32xbf16>, vector<32x128xbf16>, vector<8x128xf32> -> vector<8x128xf32>
    %121 = arith.addf %118, %120 : vector<8x128xf32>
    %cst_39 = arith.constant 5.000000e-01 : f32
    %122 = vector.broadcast %cst_39 : f32 to vector<8x128xf32>
    %123 = arith.mulf %122, %121 : vector<8x128xf32>
    %124 = math.tanh %123 : vector<8x128xf32>
    %cst_40 = arith.constant 1.000000e+00 : f32
    %125 = vector.broadcast %cst_40 : f32 to vector<8x128xf32>
    %126 = arith.addf %124, %125 : vector<8x128xf32>
    %cst_41 = arith.constant 5.000000e-01 : f32
    %127 = vector.broadcast %cst_41 : f32 to vector<8x128xf32>
    %128 = arith.mulf %127, %126 : vector<8x128xf32>
    %129 = math.tanh %121 : vector<8x128xf32>
    %130 = vector.extract_strided_slice %128 {offsets = [0, 0], sizes = [8, 32], strides = [1, 1]} : vector<8x128xf32> to vector<8x32xf32>
    %131 = vector.extract_strided_slice %128 {offsets = [0, 32], sizes = [8, 32], strides = [1, 1]} : vector<8x128xf32> to vector<8x32xf32>
    %132 = vector.extract_strided_slice %129 {offsets = [0, 64], sizes = [8, 32], strides = [1, 1]} : vector<8x128xf32> to vector<8x32xf32>
    %133 = vector.extract_strided_slice %128 {offsets = [0, 96], sizes = [8, 32], strides = [1, 1]} : vector<8x128xf32> to vector<8x32xf32>
    %134 = arith.mulf %131, %114 : vector<8x32xf32>
    %135 = arith.mulf %130, %132 : vector<8x32xf32>
    %136 = arith.addf %134, %135 : vector<8x32xf32>
    %137 = math.tanh %136 : vector<8x32xf32>
    %138 = arith.mulf %133, %137 : vector<8x32xf32>
    %139 = arith.addi %13, %c3_i32 : i32
    %140 = vector.broadcast %139 : i32 to vector<8x1xi32>
    %141 = arith.cmpi sgt, %12, %140 : vector<8x1xi32>
    %142 = vector.shape_cast %141 : vector<8x1xi1> to vector<8x1xi1>
    %143 = vector.broadcast %142 : vector<8x1xi1> to vector<8x32xi1>
    %144 = arith.select %143, %138, %111 : vector<8x32xi1>, vector<8x32xf32>
    %145 = vector.shape_cast %141 : vector<8x1xi1> to vector<8x1xi1>
    %146 = vector.broadcast %145 : vector<8x1xi1> to vector<8x32xi1>
    %147 = arith.select %146, %136, %114 : vector<8x32xi1>, vector<8x32xf32>
    %c4_i32 = arith.constant 4 : i32
    %c8_i32_42 = arith.constant 8 : i32
    %148 = arith.muli %c4_i32, %c8_i32_42 : i32
    %149 = tpu.assume_multiple %148, 8 : i32
    %150 = arith.index_cast %149 : i32 to index
    %c0_43 = arith.constant 0 : index
    %151 = vector.load %arg12[%150, %c0_43] : memref<64x128xf32, #tpu.memory_space<vmem>>, vector<8x128xf32>
    %152 = arith.truncf %144 : vector<8x32xf32> to vector<8x32xbf16>
    %cst_44 = arith.constant dense<0.000000e+00> : vector<8x128xf32>
    %153 = tpu.matmul %152, %11, %cst_44 {dimension_numbers = #tpu.dot_dimension_numbers<[1], [0], [0], [1], [0, 0, 1, 1], [], []>} : vector<8x32xbf16>, vector<32x128xbf16>, vector<8x128xf32> -> vector<8x128xf32>
    %154 = arith.addf %151, %153 : vector<8x128xf32>
    %cst_45 = arith.constant 5.000000e-01 : f32
    %155 = vector.broadcast %cst_45 : f32 to vector<8x128xf32>
    %156 = arith.mulf %155, %154 : vector<8x128xf32>
    %157 = math.tanh %156 : vector<8x128xf32>
    %cst_46 = arith.constant 1.000000e+00 : f32
    %158 = vector.broadcast %cst_46 : f32 to vector<8x128xf32>
    %159 = arith.addf %157, %158 : vector<8x128xf32>
    %cst_47 = arith.constant 5.000000e-01 : f32
    %160 = vector.broadcast %cst_47 : f32 to vector<8x128xf32>
    %161 = arith.mulf %160, %159 : vector<8x128xf32>
    %162 = math.tanh %154 : vector<8x128xf32>
    %163 = vector.extract_strided_slice %161 {offsets = [0, 0], sizes = [8, 32], strides = [1, 1]} : vector<8x128xf32> to vector<8x32xf32>
    %164 = vector.extract_strided_slice %161 {offsets = [0, 32], sizes = [8, 32], strides = [1, 1]} : vector<8x128xf32> to vector<8x32xf32>
    %165 = vector.extract_strided_slice %162 {offsets = [0, 64], sizes = [8, 32], strides = [1, 1]} : vector<8x128xf32> to vector<8x32xf32>
    %166 = vector.extract_strided_slice %161 {offsets = [0, 96], sizes = [8, 32], strides = [1, 1]} : vector<8x128xf32> to vector<8x32xf32>
    %167 = arith.mulf %164, %147 : vector<8x32xf32>
    %168 = arith.mulf %163, %165 : vector<8x32xf32>
    %169 = arith.addf %167, %168 : vector<8x32xf32>
    %170 = math.tanh %169 : vector<8x32xf32>
    %171 = arith.mulf %166, %170 : vector<8x32xf32>
    %172 = arith.addi %13, %c4_i32 : i32
    %173 = vector.broadcast %172 : i32 to vector<8x1xi32>
    %174 = arith.cmpi sgt, %12, %173 : vector<8x1xi32>
    %175 = vector.shape_cast %174 : vector<8x1xi1> to vector<8x1xi1>
    %176 = vector.broadcast %175 : vector<8x1xi1> to vector<8x32xi1>
    %177 = arith.select %176, %171, %144 : vector<8x32xi1>, vector<8x32xf32>
    %178 = vector.shape_cast %174 : vector<8x1xi1> to vector<8x1xi1>
    %179 = vector.broadcast %178 : vector<8x1xi1> to vector<8x32xi1>
    %180 = arith.select %179, %169, %147 : vector<8x32xi1>, vector<8x32xf32>
    %c5_i32 = arith.constant 5 : i32
    %c8_i32_48 = arith.constant 8 : i32
    %181 = arith.muli %c5_i32, %c8_i32_48 : i32
    %182 = tpu.assume_multiple %181, 8 : i32
    %183 = arith.index_cast %182 : i32 to index
    %c0_49 = arith.constant 0 : index
    %184 = vector.load %arg12[%183, %c0_49] : memref<64x128xf32, #tpu.memory_space<vmem>>, vector<8x128xf32>
    %185 = arith.truncf %177 : vector<8x32xf32> to vector<8x32xbf16>
    %cst_50 = arith.constant dense<0.000000e+00> : vector<8x128xf32>
    %186 = tpu.matmul %185, %11, %cst_50 {dimension_numbers = #tpu.dot_dimension_numbers<[1], [0], [0], [1], [0, 0, 1, 1], [], []>} : vector<8x32xbf16>, vector<32x128xbf16>, vector<8x128xf32> -> vector<8x128xf32>
    %187 = arith.addf %184, %186 : vector<8x128xf32>
    %cst_51 = arith.constant 5.000000e-01 : f32
    %188 = vector.broadcast %cst_51 : f32 to vector<8x128xf32>
    %189 = arith.mulf %188, %187 : vector<8x128xf32>
    %190 = math.tanh %189 : vector<8x128xf32>
    %cst_52 = arith.constant 1.000000e+00 : f32
    %191 = vector.broadcast %cst_52 : f32 to vector<8x128xf32>
    %192 = arith.addf %190, %191 : vector<8x128xf32>
    %cst_53 = arith.constant 5.000000e-01 : f32
    %193 = vector.broadcast %cst_53 : f32 to vector<8x128xf32>
    %194 = arith.mulf %193, %192 : vector<8x128xf32>
    %195 = math.tanh %187 : vector<8x128xf32>
    %196 = vector.extract_strided_slice %194 {offsets = [0, 0], sizes = [8, 32], strides = [1, 1]} : vector<8x128xf32> to vector<8x32xf32>
    %197 = vector.extract_strided_slice %194 {offsets = [0, 32], sizes = [8, 32], strides = [1, 1]} : vector<8x128xf32> to vector<8x32xf32>
    %198 = vector.extract_strided_slice %195 {offsets = [0, 64], sizes = [8, 32], strides = [1, 1]} : vector<8x128xf32> to vector<8x32xf32>
    %199 = vector.extract_strided_slice %194 {offsets = [0, 96], sizes = [8, 32], strides = [1, 1]} : vector<8x128xf32> to vector<8x32xf32>
    %200 = arith.mulf %197, %180 : vector<8x32xf32>
    %201 = arith.mulf %196, %198 : vector<8x32xf32>
    %202 = arith.addf %200, %201 : vector<8x32xf32>
    %203 = math.tanh %202 : vector<8x32xf32>
    %204 = arith.mulf %199, %203 : vector<8x32xf32>
    %205 = arith.addi %13, %c5_i32 : i32
    %206 = vector.broadcast %205 : i32 to vector<8x1xi32>
    %207 = arith.cmpi sgt, %12, %206 : vector<8x1xi32>
    %208 = vector.shape_cast %207 : vector<8x1xi1> to vector<8x1xi1>
    %209 = vector.broadcast %208 : vector<8x1xi1> to vector<8x32xi1>
    %210 = arith.select %209, %204, %177 : vector<8x32xi1>, vector<8x32xf32>
    %211 = vector.shape_cast %207 : vector<8x1xi1> to vector<8x1xi1>
    %212 = vector.broadcast %211 : vector<8x1xi1> to vector<8x32xi1>
    %213 = arith.select %212, %202, %180 : vector<8x32xi1>, vector<8x32xf32>
    %c6_i32 = arith.constant 6 : i32
    %c8_i32_54 = arith.constant 8 : i32
    %214 = arith.muli %c6_i32, %c8_i32_54 : i32
    %215 = tpu.assume_multiple %214, 8 : i32
    %216 = arith.index_cast %215 : i32 to index
    %c0_55 = arith.constant 0 : index
    %217 = vector.load %arg12[%216, %c0_55] : memref<64x128xf32, #tpu.memory_space<vmem>>, vector<8x128xf32>
    %218 = arith.truncf %210 : vector<8x32xf32> to vector<8x32xbf16>
    %cst_56 = arith.constant dense<0.000000e+00> : vector<8x128xf32>
    %219 = tpu.matmul %218, %11, %cst_56 {dimension_numbers = #tpu.dot_dimension_numbers<[1], [0], [0], [1], [0, 0, 1, 1], [], []>} : vector<8x32xbf16>, vector<32x128xbf16>, vector<8x128xf32> -> vector<8x128xf32>
    %220 = arith.addf %217, %219 : vector<8x128xf32>
    %cst_57 = arith.constant 5.000000e-01 : f32
    %221 = vector.broadcast %cst_57 : f32 to vector<8x128xf32>
    %222 = arith.mulf %221, %220 : vector<8x128xf32>
    %223 = math.tanh %222 : vector<8x128xf32>
    %cst_58 = arith.constant 1.000000e+00 : f32
    %224 = vector.broadcast %cst_58 : f32 to vector<8x128xf32>
    %225 = arith.addf %223, %224 : vector<8x128xf32>
    %cst_59 = arith.constant 5.000000e-01 : f32
    %226 = vector.broadcast %cst_59 : f32 to vector<8x128xf32>
    %227 = arith.mulf %226, %225 : vector<8x128xf32>
    %228 = math.tanh %220 : vector<8x128xf32>
    %229 = vector.extract_strided_slice %227 {offsets = [0, 0], sizes = [8, 32], strides = [1, 1]} : vector<8x128xf32> to vector<8x32xf32>
    %230 = vector.extract_strided_slice %227 {offsets = [0, 32], sizes = [8, 32], strides = [1, 1]} : vector<8x128xf32> to vector<8x32xf32>
    %231 = vector.extract_strided_slice %228 {offsets = [0, 64], sizes = [8, 32], strides = [1, 1]} : vector<8x128xf32> to vector<8x32xf32>
    %232 = vector.extract_strided_slice %227 {offsets = [0, 96], sizes = [8, 32], strides = [1, 1]} : vector<8x128xf32> to vector<8x32xf32>
    %233 = arith.mulf %230, %213 : vector<8x32xf32>
    %234 = arith.mulf %229, %231 : vector<8x32xf32>
    %235 = arith.addf %233, %234 : vector<8x32xf32>
    %236 = math.tanh %235 : vector<8x32xf32>
    %237 = arith.mulf %232, %236 : vector<8x32xf32>
    %238 = arith.addi %13, %c6_i32 : i32
    %239 = vector.broadcast %238 : i32 to vector<8x1xi32>
    %240 = arith.cmpi sgt, %12, %239 : vector<8x1xi32>
    %241 = vector.shape_cast %240 : vector<8x1xi1> to vector<8x1xi1>
    %242 = vector.broadcast %241 : vector<8x1xi1> to vector<8x32xi1>
    %243 = arith.select %242, %237, %210 : vector<8x32xi1>, vector<8x32xf32>
    %244 = vector.shape_cast %240 : vector<8x1xi1> to vector<8x1xi1>
    %245 = vector.broadcast %244 : vector<8x1xi1> to vector<8x32xi1>
    %246 = arith.select %245, %235, %213 : vector<8x32xi1>, vector<8x32xf32>
    %c7_i32 = arith.constant 7 : i32
    %c8_i32_60 = arith.constant 8 : i32
    %247 = arith.muli %c7_i32, %c8_i32_60 : i32
    %248 = tpu.assume_multiple %247, 8 : i32
    %249 = arith.index_cast %248 : i32 to index
    %c0_61 = arith.constant 0 : index
    %250 = vector.load %arg12[%249, %c0_61] : memref<64x128xf32, #tpu.memory_space<vmem>>, vector<8x128xf32>
    %251 = arith.truncf %243 : vector<8x32xf32> to vector<8x32xbf16>
    %cst_62 = arith.constant dense<0.000000e+00> : vector<8x128xf32>
    %252 = tpu.matmul %251, %11, %cst_62 {dimension_numbers = #tpu.dot_dimension_numbers<[1], [0], [0], [1], [0, 0, 1, 1], [], []>} : vector<8x32xbf16>, vector<32x128xbf16>, vector<8x128xf32> -> vector<8x128xf32>
    %253 = arith.addf %250, %252 : vector<8x128xf32>
    %cst_63 = arith.constant 5.000000e-01 : f32
    %254 = vector.broadcast %cst_63 : f32 to vector<8x128xf32>
    %255 = arith.mulf %254, %253 : vector<8x128xf32>
    %256 = math.tanh %255 : vector<8x128xf32>
    %cst_64 = arith.constant 1.000000e+00 : f32
    %257 = vector.broadcast %cst_64 : f32 to vector<8x128xf32>
    %258 = arith.addf %256, %257 : vector<8x128xf32>
    %cst_65 = arith.constant 5.000000e-01 : f32
    %259 = vector.broadcast %cst_65 : f32 to vector<8x128xf32>
    %260 = arith.mulf %259, %258 : vector<8x128xf32>
    %261 = math.tanh %253 : vector<8x128xf32>
    %262 = vector.extract_strided_slice %260 {offsets = [0, 0], sizes = [8, 32], strides = [1, 1]} : vector<8x128xf32> to vector<8x32xf32>
    %263 = vector.extract_strided_slice %260 {offsets = [0, 32], sizes = [8, 32], strides = [1, 1]} : vector<8x128xf32> to vector<8x32xf32>
    %264 = vector.extract_strided_slice %261 {offsets = [0, 64], sizes = [8, 32], strides = [1, 1]} : vector<8x128xf32> to vector<8x32xf32>
    %265 = vector.extract_strided_slice %260 {offsets = [0, 96], sizes = [8, 32], strides = [1, 1]} : vector<8x128xf32> to vector<8x32xf32>
    %266 = arith.mulf %263, %246 : vector<8x32xf32>
    %267 = arith.mulf %262, %264 : vector<8x32xf32>
    %268 = arith.addf %266, %267 : vector<8x32xf32>
    %269 = math.tanh %268 : vector<8x32xf32>
    %270 = arith.mulf %265, %269 : vector<8x32xf32>
    %271 = arith.addi %13, %c7_i32 : i32
    %272 = vector.broadcast %271 : i32 to vector<8x1xi32>
    %273 = arith.cmpi sgt, %12, %272 : vector<8x1xi32>
    %274 = vector.shape_cast %273 : vector<8x1xi1> to vector<8x1xi1>
    %275 = vector.broadcast %274 : vector<8x1xi1> to vector<8x32xi1>
    %276 = arith.select %275, %270, %243 : vector<8x32xi1>, vector<8x32xf32>
    %277 = vector.shape_cast %273 : vector<8x1xi1> to vector<8x1xi1>
    %278 = vector.broadcast %277 : vector<8x1xi1> to vector<8x32xi1>
    %279 = arith.select %278, %268, %246 : vector<8x32xi1>, vector<8x32xf32>
    %c8_i32_66 = arith.constant 8 : i32
    %c0_67 = arith.constant 0 : index
    %c0_68 = arith.constant 0 : index
    %280 = vector.load %arg10[%c0_67, %c0_68] : memref<8x32xf32, #tpu.memory_space<vmem>>, vector<8x32xf32>
    tpu.vector_store %arg10[%c0_67, %c0_68], %276 {strides = array<i32>} : memref<8x32xf32, #tpu.memory_space<vmem>>, vector<8x32xf32>,
    %c0_69 = arith.constant 0 : index
    %c0_70 = arith.constant 0 : index
    %281 = vector.load %arg11[%c0_69, %c0_70] : memref<8x32xf32, #tpu.memory_space<vmem>>, vector<8x32xf32>
    tpu.vector_store %arg11[%c0_69, %c0_70], %279 {strides = array<i32>} : memref<8x32xf32, #tpu.memory_space<vmem>>, vector<8x32xf32>,
    %c0_i32_71 = arith.constant 0 : i32
    %282 = arith.cmpi eq, %arg1, %c0_i32_71 : i32
    %283 = arith.extui %282 : i1 to i32
    %c0_i32_72 = arith.constant 0 : i32
    %284 = arith.cmpi ne, %283, %c0_i32_72 : i32
    scf.if %284 {
      %c0_73 = arith.constant 0 : index
      %c0_74 = arith.constant 0 : index
      %285 = vector.load %arg7[%c0_73, %c0_74] : memref<32x128xf32, #tpu.memory_space<vmem>>, vector<32x128xf32>
      %cst_75 = arith.constant dense<0.000000e+00> : vector<8x128xf32>
      %286 = tpu.matmul %276, %285, %cst_75 {dimension_numbers = #tpu.dot_dimension_numbers<[1], [0], [0], [1], [0, 0, 1, 1], [], []>} : vector<8x32xf32>, vector<32x128xf32>, vector<8x128xf32> -> vector<8x128xf32>
      %c0_76 = arith.constant 0 : index
      %c0_77 = arith.constant 0 : index
      %287 = vector.load %arg8[%c0_76, %c0_77] : memref<1x128xf32, #tpu.memory_space<vmem>>, vector<1x128xf32>
      %288 = vector.broadcast %287 : vector<1x128xf32> to vector<8x128xf32>
      %289 = arith.addf %286, %288 : vector<8x128xf32>
      %290 = arith.negf %289 : vector<8x128xf32>
      %291 = math.exp %290 : vector<8x128xf32>
      %cst_78 = arith.constant 1.000000e+00 : f32
      %292 = vector.broadcast %cst_78 : f32 to vector<8x128xf32>
      %293 = arith.addf %292, %291 : vector<8x128xf32>
      %294 = arith.divf %292, %293 : vector<8x128xf32>
      %c0_79 = arith.constant 0 : index
      %c0_80 = arith.constant 0 : index
      %295 = vector.load %arg9[%c0_79, %c0_80] : memref<8x128xf32, #tpu.memory_space<vmem>>, vector<8x128xf32>
      tpu.vector_store %arg9[%c0_79, %c0_80], %294 {strides = array<i32>} : memref<8x128xf32, #tpu.memory_space<vmem>>, vector<8x128xf32>,
    } else {
    }
    return
  }
  func.func @transform_0(%arg0: i32, %arg1: i32) -> (i32, i32) {
    %c0_i32 = arith.constant 0 : i32
    %c0_i32_0 = arith.constant 0 : i32
    return %arg0, %c0_i32 : i32, i32
  }
  func.func @transform_1(%arg0: i32, %arg1: i32) -> (i32, i32, i32) {
    %c0_i32 = arith.constant 0 : i32
    %c0_i32_0 = arith.constant 0 : i32
    return %arg1, %arg0, %c0_i32 : i32, i32, i32
  }
  func.func @transform_2(%arg0: i32, %arg1: i32) -> (i32, i32) {
    %c0_i32 = arith.constant 0 : i32
    %c0_i32_0 = arith.constant 0 : i32
    %c0_i32_1 = arith.constant 0 : i32
    return %c0_i32, %c0_i32_0 : i32, i32
  }
  func.func @transform_3(%arg0: i32, %arg1: i32) -> (i32, i32) {
    %c0_i32 = arith.constant 0 : i32
    %c0_i32_0 = arith.constant 0 : i32
    %c0_i32_1 = arith.constant 0 : i32
    return %c0_i32, %c0_i32_0 : i32, i32
  }
  func.func @transform_4(%arg0: i32, %arg1: i32) -> (i32, i32) {
    %c0_i32 = arith.constant 0 : i32
    %c0_i32_0 = arith.constant 0 : i32
    %c0_i32_1 = arith.constant 0 : i32
    return %c0_i32, %c0_i32_0 : i32, i32
  }
  func.func @transform_5(%arg0: i32, %arg1: i32) -> (i32, i32) {
    %c0_i32 = arith.constant 0 : i32
    %c0_i32_0 = arith.constant 0 : i32
    %c0_i32_1 = arith.constant 0 : i32
    return %c0_i32, %c0_i32_0 : i32, i32
  }
  func.func @transform_6(%arg0: i32, %arg1: i32) -> (i32, i32) {
    %c0_i32 = arith.constant 0 : i32
    %c0_i32_0 = arith.constant 0 : i32
    %c0_i32_1 = arith.constant 0 : i32
    return %c0_i32, %c0_i32_0 : i32, i32
  }
  func.func @transform_7(%arg0: i32, %arg1: i32) -> (i32, i32) {
    %c0_i32 = arith.constant 0 : i32
    %c0_i32_0 = arith.constant 0 : i32
    return %arg0, %c0_i32 : i32, i32
  }
}

</mosaic_0001>

<llo_original>
// kernel: tpu_custom_call.1
$region0: #{tpu_custom_call.1}
  #allocation0 [shape = 'u32[]', space=smem, size = 0x4, offset = 0x4, fixed_abs, tag = 'smem constant byte address 0x4 - core index']
  #allocation1 [shape = 'u32[144,128]{1,0:T(1,128)}', space=vmem, size = 0x12000, scoped, tag = 'internal scratch']
  #allocation2 [shape = 'f32[8,32]{1,0:T(8,128)}', space=vmem, size = 0x1000, scoped, tag = 'scratch operand']
  #allocation3 [shape = 'f32[8,32]{1,0:T(8,128)}', space=vmem, size = 0x1000, scoped, tag = 'scratch operand']
  #allocation4 [shape = 'f32[64,128]{1,0:T(8,128)}', space=vmem, size = 0x8000, scoped, tag = 'scratch operand']
  %s0 = inlined_call_operand.vmem [shape: s32[8,1], index: 0, kind: input, shape index: {}]
  %s1 = inlined_call_operand.hbm [shape: bf16[8,8,16], index: 1, kind: input, shape index: {}]
  %s2 = inlined_call_operand.hbm [shape: bf16[16,128], index: 2, kind: input, shape index: {}]
  %s3 = inlined_call_operand.vmem [shape: bf16[32,128], index: 3, kind: input, shape index: {}]
  %s4 = inlined_call_operand.vmem [shape: f32[1,128], index: 4, kind: input, shape index: {}]
  %s5 = inlined_call_operand.hbm [shape: f32[32,128], index: 5, kind: input, shape index: {}]
  %s6 = inlined_call_operand.vmem [shape: f32[1,128], index: 6, kind: input, shape index: {}]
  %s7 = inlined_call_operand.hbm [shape: f32[8,128], index: 7, kind: output, shape index: {}]
  %s8 = sld [smem:[#allocation0]]
  $region58: #{tpu_custom_call.1} parent=0
    _
  %s10 = ssub.s32 1, %s8
  %s11 = scalar_select 0, %s10, %s8
  $region1: #{tpu_custom_call.1} parent=0
    #allocation5 [shape = 'u8[16384]{0}', space=vmem, size = 0x4000, scoped, tag = 'input window, operand 1, single buffered']
    #allocation6 [shape = 's32[1]{0}', space=sflag, size = 0x4, scoped, tag = 'scoped memory for tpu_custom_call.1']
    #allocation7 [shape = 's32[1]{0}', space=sflag, size = 0x4, scoped, tag = 'scoped memory for tpu_custom_call.1']
    #allocation8 [shape = 'u8[4096]{0}', space=vmem, size = 0x1000, scoped, tag = 'input window, operand 2, single buffered']
    #allocation9 [shape = 's32[1]{0}', space=sflag, size = 0x4, scoped, tag = 'scoped memory for tpu_custom_call.1']
    #allocation10 [shape = 'u8[16384]{0}', space=vmem, size = 0x4000, scoped, tag = 'input window, operand 5, single buffered']
    #allocation11 [shape = 'u8[4096]{0}', space=vmem, size = 0x1000, scoped, tag = 'output window, operand 0, single buffered']
    %12 = vsyncpa [#allocation6], 0
    %13 = vsyncpa [#allocation9], 0
    %14 = vsyncpa [#allocation7], 0
    // Predicated region
    $region2: #{tpu_custom_call.1} parent=1 // pred_check
      _
    $region3: #{tpu_custom_call.1} parent=1 // pred_check_branch
      %16 = sbr.rel (0) target = $region5
    $region4: #{tpu_custom_call.1} parent=1 // pred_region
      _
    $region5: #{tpu_custom_call.1} parent=1 // pred_fallthru
      _
    // Predicated region
    $region6: #{tpu_custom_call.1} parent=1 // pred_check
      _
    $region7: #{tpu_custom_call.1} parent=1 // pred_check_branch
      %18 = sbr.rel (0) target = $region9
    $region8: #{tpu_custom_call.1} parent=1 // pred_region
      %s20 = ssub.s32 512, 512
      %21 = vsyncadd [#allocation6], %s20
      %s22 = sshll.u32 [#allocation5], 4
      %s23 = int_to_ptr.vmem [resolvable:$true] %s22
      %28 = dma.hbm_to_vmem [thread:$0]  %s1, 512, %s23, [#allocation6], 64, 64, 4
    $region9: #{tpu_custom_call.1} parent=1 // pred_fallthru
      _
    // Predicated region
    $region10: #{tpu_custom_call.1} parent=1 // pred_check
      _
    $region11: #{tpu_custom_call.1} parent=1 // pred_check_branch
      %30 = sbr.rel (0) target = $region13
    $region12: #{tpu_custom_call.1} parent=1 // pred_region
      %s32 = ssub.s32 128, 128
      %33 = vsyncadd [#allocation9], %s32
      %s34 = sshll.u32 [#allocation8], 4
      %s35 = int_to_ptr.vmem [resolvable:$true] %s34
      %40 = dma.hbm_to_vmem [thread:$0]  %s2, 128, %s35, [#allocation9], 64, 64, 4
    $region13: #{tpu_custom_call.1} parent=1 // pred_fallthru
      _
    // Predicated region
    $region14: #{tpu_custom_call.1} parent=1 // pred_check
      _
    $region15: #{tpu_custom_call.1} parent=1 // pred_check_branch
      %42 = sbr.rel (0) target = $region17
    $region16: #{tpu_custom_call.1} parent=1 // pred_region
      _
    $region17: #{tpu_custom_call.1} parent=1 // pred_fallthru
      _
    // Predicated region
    $region18: #{tpu_custom_call.1} parent=1 // pred_check
      _
    $region19: #{tpu_custom_call.1} parent=1 // pred_check_branch
      %44 = sbr.rel (0) target = $region21
    $region20: #{tpu_custom_call.1} parent=1 // pred_region
      _
    $region21: #{tpu_custom_call.1} parent=1 // pred_fallthru
      _
    // Predicated region
    $region22: #{tpu_custom_call.1} parent=1 // pred_check
      _
    $region23: #{tpu_custom_call.1} parent=1 // pred_check_branch
      %46 = sbr.rel (0) target = $region25
    $region24: #{tpu_custom_call.1} parent=1 // pred_region
      %s48 = ssub.s32 512, 512
      %49 = vsyncadd [#allocation9], %s48
      %s50 = sshll.u32 [#allocation10], 4
      %s51 = int_to_ptr.vmem [resolvable:$true] %s50
      %56 = dma.hbm_to_vmem [thread:$0]  %s5, 512, %s51, [#allocation9], 128, 128, 8
    $region25: #{tpu_custom_call.1} parent=1 // pred_fallthru
      _
    // Predicated region
    $region26: #{tpu_custom_call.1} parent=1 // pred_check
      _
    $region27: #{tpu_custom_call.1} parent=1 // pred_check_branch
      %58 = sbr.rel (0) target = $region29
    $region28: #{tpu_custom_call.1} parent=1 // pred_region
      _
    $region29: #{tpu_custom_call.1} parent=1 // pred_fallthru
      _
    // Predicated region
    $region30: #{tpu_custom_call.1} parent=1 // pred_check
      _
    $region31: #{tpu_custom_call.1} parent=1 // pred_check_branch
      %60 = sbr.rel (0) target = $region33
    $region32: #{tpu_custom_call.1} parent=1 // pred_region
      %61 = dma.done [#allocation6], 512
    $region33: #{tpu_custom_call.1} parent=1 // pred_fallthru
      _
    // Predicated region
    $region34: #{tpu_custom_call.1} parent=1 // pred_check
      _
    $region35: #{tpu_custom_call.1} parent=1 // pred_check_branch
      %63 = sbr.rel (0) target = $region37
    $region36: #{tpu_custom_call.1} parent=1 // pred_region
      %64 = dma.done [#allocation9], 128
    $region37: #{tpu_custom_call.1} parent=1 // pred_fallthru
      _
    // Predicated region
    $region38: #{tpu_custom_call.1} parent=1 // pred_check
      _
    $region39: #{tpu_custom_call.1} parent=1 // pred_check_branch
      %66 = sbr.rel (0) target = $region41
    $region40: #{tpu_custom_call.1} parent=1 // pred_region
      %67 = dma.done [#allocation9], 512
    $region41: #{tpu_custom_call.1} parent=1 // pred_fallthru
      _
    %p69 = scmp.eq.s32.totalorder 0, 0
    // Predicated region
    $region42: #{tpu_custom_call.1} parent=1 // pred_check
      %p70 = pneg %p69
    $region43: #{tpu_custom_call.1} parent=1 // pred_check_branch
      %72 = sbr.rel (%p70) target = $region45
    $region44: #{tpu_custom_call.1} parent=1 // pred_region
      %vm73 = vcmask 261120
      %74 = vst.msk [vmem:[#allocation2] sm:$0xff] %vm73, 0.0
      %75 = vst.msk [vmem:[#allocation3] sm:$0xff] %vm73, 0.0
    $region45: #{tpu_custom_call.1} parent=1 // pred_fallthru
      _
    %v76 = vld [vmem:[#allocation5] sm:$0xf]
    %v77 = vld [vmem:[#allocation5 + $0x4] sm:$0xf]
    %v78 = vld [vmem:[#allocation5 + $0x8] sm:$0xf]
    %v79 = vld [vmem:[#allocation5 + $0xc] sm:$0xf]
    %v80 = vld [vmem:[#allocation5 + $0x10] sm:$0xf]
    %v81 = vld [vmem:[#allocation5 + $0x14] sm:$0xf]
    %v82 = vld [vmem:[#allocation5 + $0x18] sm:$0xf]
    %v83 = vld [vmem:[#allocation5 + $0x1c] sm:$0xf]
    %v84 = vld [vmem:[#allocation8] sm:$0xf]
    %v85 = vld [vmem:[#allocation8 + $0x4] sm:$0xf]
    %v86 = vld [vmem:[%s4] sm:$0x1]
    %v88 = vlaneseq
    %v89 = vshrl.u32 %v88, 7
    %v90 = vsub.s32 0, %v89
    %v91 = vrot.slane %v86, %v90
    %v101 = vunpack.c.l.b16 %v76
    %v102 = vunpack.c.l.b16 %v77
    %v103 = vunpack.c.l.b16 %v78
    %v104 = vunpack.c.l.b16 %v79
    %v105 = vunpack.c.l.b16 %v80
    %v106 = vunpack.c.l.b16 %v81
    %v107 = vunpack.c.l.b16 %v82
    %v108 = vunpack.c.l.b16 %v83
    %v109 = vpack.c.b16 %v102, %v101
    %v110 = vpack.c.b16 %v104, %v103
    %v111 = vpack.c.b16 %v106, %v105
    %v112 = vpack.c.b16 %v108, %v107
    %v115 = vunpack.c.l.b16 %v84
    %v116 = vunpack.c.l.b16 %v85
    %v117 = vpack.c.b16 %v116, %v115
    %vm119 = vcmask 130048
    %v121 = vsel %vm119, %v109, 0
    %v124 = vsel %vm119, %v110, 0
    %v127 = vsel %vm119, %v111, 0
    %v130 = vsel %vm119, %v112, 0
    %132 = vmatprep.subr.bf16.mxu0 0
    %133 = vmatpush1.bf16.msra.mxu0 %v117
    %134 = vmatprep.subr.bf16.mxu0 0
    %135 = vmatpush1.bf16.msra.mxu0 0
    %136 = vmatprep.subr.bf16.mxu0 0
    %137 = vmatpush1.bf16.msra.mxu0 0
    %138 = vmatprep.subr.bf16.mxu0 0
    %139 = vmatpush1.bf16.msra.mxu0 0
    %140 = vmatprep.subr.bf16.mxu0 0
    %141 = vmatpush1.bf16.msra.mxu0 0
    %142 = vmatprep.subr.bf16.mxu0 0
    %143 = vmatpush1.bf16.msra.mxu0 0
    %144 = vmatprep.subr.bf16.mxu0 0
    %145 = vmatpush1.bf16.msra.mxu0 0
    %146 = vmatprep.subr.bf16.mxu0 0
    %147 = vmatpush1.bf16.msra.mxu0 0
    %148 = vmatprep.subr.bf16.mxu0 0
    %149 = vmatpush1.bf16.msra.mxu0 0
    %150 = vmatprep.subr.bf16.mxu0 0
    %151 = vmatpush1.bf16.msra.mxu0 0
    %152 = vmatprep.subr.bf16.mxu0 0
    %153 = vmatpush1.bf16.msra.mxu0 0
    %154 = vmatprep.subr.bf16.mxu0 0
    %155 = vmatpush1.bf16.msra.mxu0 0
    %156 = vmatprep.subr.bf16.mxu0 0
    %157 = vmatpush1.bf16.msra.mxu0 0
    %158 = vmatprep.subr.bf16.mxu0 0
    %159 = vmatpush1.bf16.msra.mxu0 0
    %160 = vmatprep.subr.bf16.mxu0 0
    %161 = vmatpush1.bf16.msra.mxu0 0
    %162 = vmatprep.subr.bf16.mxu0 0
    %163 = vmatpush1.bf16.msra.mxu0 0
    %164 = vmatprep.mubr.bf16.mxu0 0
    %165 = vmatmul.mubr.bf16.gmra.mrb[0].mxu0 %v121
    %v166 = vpop.f32.mrb[0].mxu0
    %v167 = vadd.f32 %v91, %v166
    %v168 = vpop.f32.mrb[0].mxu0
    %v169 = vpop.f32.mrb[0].mxu0
    %v170 = vadd.f32 %v91, %v169
    %v171 = vpop.f32.mrb[0].mxu0
    %172 = vmatprep.mubr.bf16.mxu0 0
    %173 = vmatmul.mubr.bf16.gmra.mrb[0].mxu0 %v124
    %v174 = vpop.f32.mrb[0].mxu0
    %v175 = vadd.f32 %v91, %v174
    %v176 = vpop.f32.mrb[0].mxu0
    %v177 = vpop.f32.mrb[0].mxu0
    %v178 = vadd.f32 %v91, %v177
    %v179 = vpop.f32.mrb[0].mxu0
    %180 = vmatprep.mubr.bf16.mxu0 0
    %181 = vmatmul.mubr.bf16.gmra.mrb[0].mxu0 %v127
    %v182 = vpop.f32.mrb[0].mxu0
    %v183 = vadd.f32 %v91, %v182
    %v184 = vpop.f32.mrb[0].mxu0
    %v185 = vpop.f32.mrb[0].mxu0
    %v186 = vadd.f32 %v91, %v185
    %v187 = vpop.f32.mrb[0].mxu0
    %188 = vmatprep.mubr.bf16.mxu0 0
    %189 = vmatmul.mubr.bf16.gmra.mrb[0].mxu0 %v130
    %v190 = vpop.f32.mrb[0].mxu0
    %v191 = vadd.f32 %v91, %v190
    %v192 = vpop.f32.mrb[0].mxu0
    %v193 = vpop.f32.mrb[0].mxu0
    %v194 = vadd.f32 %v91, %v193
    %v195 = vpop.f32.mrb[0].mxu0
    %196 = vdwg.mxu0
    %197 = vst [vmem:[#allocation4] sm:$0xff] %v167
    %198 = vst [vmem:[#allocation4 + $0x8] sm:$0xff] %v170
    %199 = vst [vmem:[#allocation4 + $0x10] sm:$0xff] %v175
    %200 = vst [vmem:[#allocation4 + $0x18] sm:$0xff] %v178
    %201 = vst [vmem:[#allocation4 + $0x20] sm:$0xff] %v183
    %202 = vst [vmem:[#allocation4 + $0x28] sm:$0xff] %v186
    %203 = vst [vmem:[#allocation4 + $0x30] sm:$0xff] %v191
    %204 = vst [vmem:[#allocation4 + $0x38] sm:$0xff] %v194
    %v205 = vld [vmem:[%s3] sm:$0xf]
    %v206 = vld [vmem:[%s3 + $0x4] sm:$0xf]
    %v207 = vld [vmem:[%s3 + $0x8] sm:$0xf]
    %v208 = vld [vmem:[%s3 + $0xc] sm:$0xf]
    %v209 = vld [vmem:[%s0] sm:$0xff]
    %s210 = smul.u32 0, 8
    %v211 = vld [vmem:[#allocation2] sm:$0xff]
    %v212 = vld [vmem:[#allocation3] sm:$0xff]
    %v213 = vld [vmem:[#allocation4] sm:$0xff]
    %v214 = vpack.c.bf16 %v211, %v211
    %v219 = vunpack.c.l.b16 %v205
    %v220 = vunpack.c.l.b16 %v206
    %v221 = vunpack.c.l.b16 %v207
    %v222 = vunpack.c.l.b16 %v208
    %v223 = vpack.c.b16 %v220, %v219
    %v224 = vpack.c.b16 %v222, %v221
    %vm227 = vcmask 261120
    %v229 = vsel %vm227, %v214, 0
    %231 = vmatprep.subr.bf16.mxu0 0
    %232 = vmatpush1.bf16.msra.mxu0 %v223
    %233 = vmatprep.subr.bf16.mxu0 0
    %234 = vmatpush1.bf16.msra.mxu0 %v224
    %235 = vmatprep.subr.bf16.mxu0 0
    %236 = vmatpush1.bf16.msra.mxu0 0
    %237 = vmatprep.subr.bf16.mxu0 0
    %238 = vmatpush1.bf16.msra.mxu0 0
    %239 = vmatprep.subr.bf16.mxu0 0
    %240 = vmatpush1.bf16.msra.mxu0 0
    %241 = vmatprep.subr.bf16.mxu0 0
    %242 = vmatpush1.bf16.msra.mxu0 0
    %243 = vmatprep.subr.bf16.mxu0 0
    %244 = vmatpush1.bf16.msra.mxu0 0
    %245 = vmatprep.subr.bf16.mxu0 0
    %246 = vmatpush1.bf16.msra.mxu0 0
    %247 = vmatprep.subr.bf16.mxu0 0
    %248 = vmatpush1.bf16.msra.mxu0 0
    %249 = vmatprep.subr.bf16.mxu0 0
    %250 = vmatpush1.bf16.msra.mxu0 0
    %251 = vmatprep.subr.bf16.mxu0 0
    %252 = vmatpush1.bf16.msra.mxu0 0
    %253 = vmatprep.subr.bf16.mxu0 0
    %254 = vmatpush1.bf16.msra.mxu0 0
    %255 = vmatprep.subr.bf16.mxu0 0
    %256 = vmatpush1.bf16.msra.mxu0 0
    %257 = vmatprep.subr.bf16.mxu0 0
    %258 = vmatpush1.bf16.msra.mxu0 0
    %259 = vmatprep.subr.bf16.mxu0 0
    %260 = vmatpush1.bf16.msra.mxu0 0
    %261 = vmatprep.subr.bf16.mxu0 0
    %262 = vmatpush1.bf16.msra.mxu0 0
    %263 = vmatprep.mubr.bf16.mxu0 0
    %264 = vmatmul.mubr.bf16.gmra.mrb[0].mxu0 %v229
    %v265 = vpop.f32.mrb[0].mxu0
    %v266 = vadd.f32 0.0, %v265
    %v267 = vpop.f32.mrb[0].mxu0
    %v268 = vpop.f32.mrb[0].mxu0
    %v269 = vpop.f32.mrb[0].mxu0
    %270 = vdwg.mxu0
    %v271 = vadd.f32 %v213, %v266
    %v272 = vmul.f32 %v271, 0.5
    %v273 = vtanh.pop %v272
    %v274 = vadd.f32 %v273, 1.0
    %v275 = vmul.f32 %v274, 0.5
    %v276 = vtanh.pop %v271
    %278 = vrot.lane.b32.xlu0 %v212, 32
    %v279 = vpop.permute.xlu0 %278
    %v281 = vmul.f32 %v275, %v279
    %283 = vrot.lane.b32.xlu0 %v276, 64
    %v284 = vpop.permute.xlu0 %283
    %v286 = vmul.f32 %v275, %v284
    %288 = vrot.lane.b32.xlu0 %v286, 32
    %v289 = vpop.permute.xlu0 %288
    %v291 = vadd.f32 %v281, %v289
    %v292 = vtanh.pop %v291
    %294 = vrot.lane.b32.xlu0 %v292, 64
    %v295 = vpop.permute.xlu0 %294
    %v297 = vmul.f32 %v275, %v295
    %v298 = vstv %s210
    %vm299 = vcmp.gt.s32.totalorder %v209, %v298
    %v300 = vsel %vm299, 1, 0
    %301 = vset.pattern.permute.xlu0 0
    %302 = vperm.xlu0 %301, %v300
    %v303 = vpop.permute.xlu0 %302
    %vm304 = vcmp.eq.s32.totalorder %v303, 1
    %306 = vrot.lane.b32.xlu0 %v211, 96
    %v307 = vpop.permute.xlu0 %306
    %v309 = vsel %vm304, %v297, %v307
    %v310 = vsel %vm304, %v291, %v279
    %s311 = scalar_lea.vmem [#allocation4], 8
    %v312 = vld [vmem:[%s311] sm:$0xff]
    %v313 = vpack.c.bf16 %v309, %v309
    %315 = vrot.lane.b32.xlu0 %v313, 32
    %v316 = vpop.permute.xlu0 %315
    %v318 = vsel %vm227, %v316, 0
    %320 = vmatprep.subr.bf16.mxu0 0
    %321 = vmatpush1.bf16.msra.mxu0 %v223
    %322 = vmatprep.subr.bf16.mxu0 0
    %323 = vmatpush1.bf16.msra.mxu0 %v224
    %324 = vmatprep.subr.bf16.mxu0 0
    %325 = vmatpush1.bf16.msra.mxu0 0
    %326 = vmatprep.subr.bf16.mxu0 0
    %327 = vmatpush1.bf16.msra.mxu0 0
    %328 = vmatprep.subr.bf16.mxu0 0
    %329 = vmatpush1.bf16.msra.mxu0 0
    %330 = vmatprep.subr.bf16.mxu0 0
    %331 = vmatpush1.bf16.msra.mxu0 0
    %332 = vmatprep.subr.bf16.mxu0 0
    %333 = vmatpush1.bf16.msra.mxu0 0
    %334 = vmatprep.subr.bf16.mxu0 0
    %335 = vmatpush1.bf16.msra.mxu0 0
    %336 = vmatprep.subr.bf16.mxu0 0
    %337 = vmatpush1.bf16.msra.mxu0 0
    %338 = vmatprep.subr.bf16.mxu0 0
    %339 = vmatpush1.bf16.msra.mxu0 0
    %340 = vmatprep.subr.bf16.mxu0 0
    %341 = vmatpush1.bf16.msra.mxu0 0
    %342 = vmatprep.subr.bf16.mxu0 0
    %343 = vmatpush1.bf16.msra.mxu0 0
    %344 = vmatprep.subr.bf16.mxu0 0
    %345 = vmatpush1.bf16.msra.mxu0 0
    %346 = vmatprep.subr.bf16.mxu0 0
    %347 = vmatpush1.bf16.msra.mxu0 0
    %348 = vmatprep.subr.bf16.mxu0 0
    %349 = vmatpush1.bf16.msra.mxu0 0
    %350 = vmatprep.subr.bf16.mxu0 0
    %351 = vmatpush1.bf16.msra.mxu0 0
    %352 = vmatprep.mubr.bf16.mxu0 0
    %353 = vmatmul.mubr.bf16.gmra.mrb[0].mxu0 %v318
    %v354 = vpop.f32.mrb[0].mxu0
    %v355 = vadd.f32 0.0, %v354
    %v356 = vpop.f32.mrb[0].mxu0
    %v357 = vpop.f32.mrb[0].mxu0
    %v358 = vpop.f32.mrb[0].mxu0
    %359 = vdwg.mxu0
    %v360 = vadd.f32 %v312, %v355
    %v361 = vmul.f32 %v360, 0.5
    %v362 = vtanh.pop %v361
    %v363 = vadd.f32 %v362, 1.0
    %v364 = vmul.f32 %v363, 0.5
    %v365 = vtanh.pop %v360
    %v366 = vmul.f32 %v364, %v310
    %368 = vrot.lane.b32.xlu0 %v365, 64
    %v369 = vpop.permute.xlu0 %368
    %v371 = vmul.f32 %v364, %v369
    %373 = vrot.lane.b32.xlu0 %v371, 32
    %v374 = vpop.permute.xlu0 %373
    %v376 = vadd.f32 %v366, %v374
    %v377 = vtanh.pop %v376
    %379 = vrot.lane.b32.xlu0 %v377, 64
    %v380 = vpop.permute.xlu0 %379
    %v382 = vmul.f32 %v364, %v380
    %s383 = sadd.s32 %s210, 1
    %v384 = vstv %s383
    %vm385 = vcmp.gt.s32.totalorder %v209, %v384
    %v386 = vsel %vm385, 1, 0
    %387 = vset.pattern.permute.xlu0 0
    %388 = vperm.xlu0 %387, %v386
    %v389 = vpop.permute.xlu0 %388
    %vm390 = vcmp.eq.s32.totalorder %v389, 1
    %v391 = vsel %vm390, %v382, %v309
    %v392 = vsel %vm390, %v376, %v310
    %s393 = scalar_lea.vmem [#allocation4], 16
    %v394 = vld [vmem:[%s393] sm:$0xff]
    %v395 = vpack.c.bf16 %v391, %v391
    %397 = vrot.lane.b32.xlu0 %v395, 32
    %v398 = vpop.permute.xlu0 %397
    %v400 = vsel %vm227, %v398, 0
    %402 = vmatprep.subr.bf16.mxu0 0
    %403 = vmatpush1.bf16.msra.mxu0 %v223
    %404 = vmatprep.subr.bf16.mxu0 0
    %405 = vmatpush1.bf16.msra.mxu0 %v224
    %406 = vmatprep.subr.bf16.mxu0 0
    %407 = vmatpush1.bf16.msra.mxu0 0
    %408 = vmatprep.subr.bf16.mxu0 0
    %409 = vmatpush1.bf16.msra.mxu0 0
    %410 = vmatprep.subr.bf16.mxu0 0
    %411 = vmatpush1.bf16.msra.mxu0 0
    %412 = vmatprep.subr.bf16.mxu0 0
    %413 = vmatpush1.bf16.msra.mxu0 0
    %414 = vmatprep.subr.bf16.mxu0 0
    %415 = vmatpush1.bf16.msra.mxu0 0
    %416 = vmatprep.subr.bf16.mxu0 0
    %417 = vmatpush1.bf16.msra.mxu0 0
    %418 = vmatprep.subr.bf16.mxu0 0
    %419 = vmatpush1.bf16.msra.mxu0 0
    %420 = vmatprep.subr.bf16.mxu0 0
    %421 = vmatpush1.bf16.msra.mxu0 0
    %422 = vmatprep.subr.bf16.mxu0 0
    %423 = vmatpush1.bf16.msra.mxu0 0
    %424 = vmatprep.subr.bf16.mxu0 0
    %425 = vmatpush1.bf16.msra.mxu0 0
    %426 = vmatprep.subr.bf16.mxu0 0
    %427 = vmatpush1.bf16.msra.mxu0 0
    %428 = vmatprep.subr.bf16.mxu0 0
    %429 = vmatpush1.bf16.msra.mxu0 0
    %430 = vmatprep.subr.bf16.mxu0 0
    %431 = vmatpush1.bf16.msra.mxu0 0
    %432 = vmatprep.subr.bf16.mxu0 0
    %433 = vmatpush1.bf16.msra.mxu0 0
    %434 = vmatprep.mubr.bf16.mxu0 0
    %435 = vmatmul.mubr.bf16.gmra.mrb[0].mxu0 %v400
    %v436 = vpop.f32.mrb[0].mxu0
    %v437 = vadd.f32 0.0, %v436
    %v438 = vpop.f32.mrb[0].mxu0
    %v439 = vpop.f32.mrb[0].mxu0
    %v440 = vpop.f32.mrb[0].mxu0
    %441 = vdwg.mxu0
    %v442 = vadd.f32 %v394, %v437
    %v443 = vmul.f32 %v442, 0.5
    %v444 = vtanh.pop %v443
    %v445 = vadd.f32 %v444, 1.0
    %v446 = vmul.f32 %v445, 0.5
    %v447 = vtanh.pop %v442
    %v448 = vmul.f32 %v446, %v392
    %450 = vrot.lane.b32.xlu0 %v447, 64
    %v451 = vpop.permute.xlu0 %450
    %v453 = vmul.f32 %v446, %v451
    %455 = vrot.lane.b32.xlu0 %v453, 32
    %v456 = vpop.permute.xlu0 %455
    %v458 = vadd.f32 %v448, %v456
    %v459 = vtanh.pop %v458
    %461 = vrot.lane.b32.xlu0 %v459, 64
    %v462 = vpop.permute.xlu0 %461
    %v464 = vmul.f32 %v446, %v462
    %s465 = sadd.s32 %s210, 2
    %v466 = vstv %s465
    %vm467 = vcmp.gt.s32.totalorder %v209, %v466
    %v468 = vsel %vm467, 1, 0
    %469 = vset.pattern.permute.xlu0 0
    %470 = vperm.xlu0 %469, %v468
    %v471 = vpop.permute.xlu0 %470
    %vm472 = vcmp.eq.s32.totalorder %v471, 1
    %v473 = vsel %vm472, %v464, %v391
    %v474 = vsel %vm472, %v458, %v392
    %s475 = scalar_lea.vmem [#allocation4], 24
    %v476 = vld [vmem:[%s475] sm:$0xff]
    %v477 = vpack.c.bf16 %v473, %v473
    %479 = vrot.lane.b32.xlu0 %v477, 32
    %v480 = vpop.permute.xlu0 %479
    %v482 = vsel %vm227, %v480, 0
    %484 = vmatprep.subr.bf16.mxu0 0
    %485 = vmatpush1.bf16.msra.mxu0 %v223
    %486 = vmatprep.subr.bf16.mxu0 0
    %487 = vmatpush1.bf16.msra.mxu0 %v224
    %488 = vmatprep.subr.bf16.mxu0 0
    %489 = vmatpush1.bf16.msra.mxu0 0
    %490 = vmatprep.subr.bf16.mxu0 0
    %491 = vmatpush1.bf16.msra.mxu0 0
    %492 = vmatprep.subr.bf16.mxu0 0
    %493 = vmatpush1.bf16.msra.mxu0 0
    %494 = vmatprep.subr.bf16.mxu0 0
    %495 = vmatpush1.bf16.msra.mxu0 0
    %496 = vmatprep.subr.bf16.mxu0 0
    %497 = vmatpush1.bf16.msra.mxu0 0
    %498 = vmatprep.subr.bf16.mxu0 0
    %499 = vmatpush1.bf16.msra.mxu0 0
    %500 = vmatprep.subr.bf16.mxu0 0
    %501 = vmatpush1.bf16.msra.mxu0 0
    %502 = vmatprep.subr.bf16.mxu0 0
    %503 = vmatpush1.bf16.msra.mxu0 0
    %504 = vmatprep.subr.bf16.mxu0 0
    %505 = vmatpush1.bf16.msra.mxu0 0
    %506 = vmatprep.subr.bf16.mxu0 0
    %507 = vmatpush1.bf16.msra.mxu0 0
    %508 = vmatprep.subr.bf16.mxu0 0
    %509 = vmatpush1.bf16.msra.mxu0 0
    %510 = vmatprep.subr.bf16.mxu0 0
    %511 = vmatpush1.bf16.msra.mxu0 0
    %512 = vmatprep.subr.bf16.mxu0 0
    %513 = vmatpush1.bf16.msra.mxu0 0
    %514 = vmatprep.subr.bf16.mxu0 0
    %515 = vmatpush1.bf16.msra.mxu0 0
    %516 = vmatprep.mubr.bf16.mxu0 0
    %517 = vmatmul.mubr.bf16.gmra.mrb[0].mxu0 %v482
    %v518 = vpop.f32.mrb[0].mxu0
    %v519 = vadd.f32 0.0, %v518
    %v520 = vpop.f32.mrb[0].mxu0
    %v521 = vpop.f32.mrb[0].mxu0
    %v522 = vpop.f32.mrb[0].mxu0
    %523 = vdwg.mxu0
    %v524 = vadd.f32 %v476, %v519
    %v525 = vmul.f32 %v524, 0.5
    %v526 = vtanh.pop %v525
    %v527 = vadd.f32 %v526, 1.0
    %v528 = vmul.f32 %v527, 0.5
    %v529 = vtanh.pop %v524
    %v530 = vmul.f32 %v528, %v474
    %532 = vrot.lane.b32.xlu0 %v529, 64
    %v533 = vpop.permute.xlu0 %532
    %v535 = vmul.f32 %v528, %v533
    %537 = vrot.lane.b32.xlu0 %v535, 32
    %v538 = vpop.permute.xlu0 %537
    %v540 = vadd.f32 %v530, %v538
    %v541 = vtanh.pop %v540
    %543 = vrot.lane.b32.xlu0 %v541, 64
    %v544 = vpop.permute.xlu0 %543
    %v546 = vmul.f32 %v528, %v544
    %s547 = sadd.s32 %s210, 3
    %v548 = vstv %s547
    %vm549 = vcmp.gt.s32.totalorder %v209, %v548
    %v550 = vsel %vm549, 1, 0
    %551 = vset.pattern.permute.xlu0 0
    %552 = vperm.xlu0 %551, %v550
    %v553 = vpop.permute.xlu0 %552
    %vm554 = vcmp.eq.s32.totalorder %v553, 1
    %v555 = vsel %vm554, %v546, %v473
    %v556 = vsel %vm554, %v540, %v474
    %s557 = scalar_lea.vmem [#allocation4], 32
    %v558 = vld [vmem:[%s557] sm:$0xff]
    %v559 = vpack.c.bf16 %v555, %v555
    %561 = vrot.lane.b32.xlu0 %v559, 32
    %v562 = vpop.permute.xlu0 %561
    %v564 = vsel %vm227, %v562, 0
    %566 = vmatprep.subr.bf16.mxu0 0
    %567 = vmatpush1.bf16.msra.mxu0 %v223
    %568 = vmatprep.subr.bf16.mxu0 0
    %569 = vmatpush1.bf16.msra.mxu0 %v224
    %570 = vmatprep.subr.bf16.mxu0 0
    %571 = vmatpush1.bf16.msra.mxu0 0
    %572 = vmatprep.subr.bf16.mxu0 0
    %573 = vmatpush1.bf16.msra.mxu0 0
    %574 = vmatprep.subr.bf16.mxu0 0
    %575 = vmatpush1.bf16.msra.mxu0 0
    %576 = vmatprep.subr.bf16.mxu0 0
    %577 = vmatpush1.bf16.msra.mxu0 0
    %578 = vmatprep.subr.bf16.mxu0 0
    %579 = vmatpush1.bf16.msra.mxu0 0
    %580 = vmatprep.subr.bf16.mxu0 0
    %581 = vmatpush1.bf16.msra.mxu0 0
    %582 = vmatprep.subr.bf16.mxu0 0
    %583 = vmatpush1.bf16.msra.mxu0 0
    %584 = vmatprep.subr.bf16.mxu0 0
    %585 = vmatpush1.bf16.msra.mxu0 0
    %586 = vmatprep.subr.bf16.mxu0 0
    %587 = vmatpush1.bf16.msra.mxu0 0
    %588 = vmatprep.subr.bf16.mxu0 0
    %589 = vmatpush1.bf16.msra.mxu0 0
    %590 = vmatprep.subr.bf16.mxu0 0
    %591 = vmatpush1.bf16.msra.mxu0 0
    %592 = vmatprep.subr.bf16.mxu0 0
    %593 = vmatpush1.bf16.msra.mxu0 0
    %594 = vmatprep.subr.bf16.mxu0 0
    %595 = vmatpush1.bf16.msra.mxu0 0
    %596 = vmatprep.subr.bf16.mxu0 0
    %597 = vmatpush1.bf16.msra.mxu0 0
    %598 = vmatprep.mubr.bf16.mxu0 0
    %599 = vmatmul.mubr.bf16.gmra.mrb[0].mxu0 %v564
    %v600 = vpop.f32.mrb[0].mxu0
    %v601 = vadd.f32 0.0, %v600
    %v602 = vpop.f32.mrb[0].mxu0
    %v603 = vpop.f32.mrb[0].mxu0
    %v604 = vpop.f32.mrb[0].mxu0
    %605 = vdwg.mxu0
    %v606 = vadd.f32 %v558, %v601
    %v607 = vmul.f32 %v606, 0.5
    %v608 = vtanh.pop %v607
    %v609 = vadd.f32 %v608, 1.0
    %v610 = vmul.f32 %v609, 0.5
    %v611 = vtanh.pop %v606
    %v612 = vmul.f32 %v610, %v556
    %614 = vrot.lane.b32.xlu0 %v611, 64
    %v615 = vpop.permute.xlu0 %614
    %v617 = vmul.f32 %v610, %v615
    %619 = vrot.lane.b32.xlu0 %v617, 32
    %v620 = vpop.permute.xlu0 %619
    %v622 = vadd.f32 %v612, %v620
    %v623 = vtanh.pop %v622
    %625 = vrot.lane.b32.xlu0 %v623, 64
    %v626 = vpop.permute.xlu0 %625
    %v628 = vmul.f32 %v610, %v626
    %s629 = sadd.s32 %s210, 4
    %v630 = vstv %s629
    %vm631 = vcmp.gt.s32.totalorder %v209, %v630
    %v632 = vsel %vm631, 1, 0
    %633 = vset.pattern.permute.xlu0 0
    %634 = vperm.xlu0 %633, %v632
    %v635 = vpop.permute.xlu0 %634
    %vm636 = vcmp.eq.s32.totalorder %v635, 1
    %v637 = vsel %vm636, %v628, %v555
    %v638 = vsel %vm636, %v622, %v556
    %s639 = scalar_lea.vmem [#allocation4], 40
    %v640 = vld [vmem:[%s639] sm:$0xff]
    %v641 = vpack.c.bf16 %v637, %v637
    %643 = vrot.lane.b32.xlu0 %v641, 32
    %v644 = vpop.permute.xlu0 %643
    %v646 = vsel %vm227, %v644, 0
    %648 = vmatprep.subr.bf16.mxu0 0
    %649 = vmatpush1.bf16.msra.mxu0 %v223
    %650 = vmatprep.subr.bf16.mxu0 0
    %651 = vmatpush1.bf16.msra.mxu0 %v224
    %652 = vmatprep.subr.bf16.mxu0 0
    %653 = vmatpush1.bf16.msra.mxu0 0
    %654 = vmatprep.subr.bf16.mxu0 0
    %655 = vmatpush1.bf16.msra.mxu0 0
    %656 = vmatprep.subr.bf16.mxu0 0
    %657 = vmatpush1.bf16.msra.mxu0 0
    %658 = vmatprep.subr.bf16.mxu0 0
    %659 = vmatpush1.bf16.msra.mxu0 0
    %660 = vmatprep.subr.bf16.mxu0 0
    %661 = vmatpush1.bf16.msra.mxu0 0
    %662 = vmatprep.subr.bf16.mxu0 0
    %663 = vmatpush1.bf16.msra.mxu0 0
    %664 = vmatprep.subr.bf16.mxu0 0
    %665 = vmatpush1.bf16.msra.mxu0 0
    %666 = vmatprep.subr.bf16.mxu0 0
    %667 = vmatpush1.bf16.msra.mxu0 0
    %668 = vmatprep.subr.bf16.mxu0 0
    %669 = vmatpush1.bf16.msra.mxu0 0
    %670 = vmatprep.subr.bf16.mxu0 0
    %671 = vmatpush1.bf16.msra.mxu0 0
    %672 = vmatprep.subr.bf16.mxu0 0
    %673 = vmatpush1.bf16.msra.mxu0 0
    %674 = vmatprep.subr.bf16.mxu0 0
    %675 = vmatpush1.bf16.msra.mxu0 0
    %676 = vmatprep.subr.bf16.mxu0 0
    %677 = vmatpush1.bf16.msra.mxu0 0
    %678 = vmatprep.subr.bf16.mxu0 0
    %679 = vmatpush1.bf16.msra.mxu0 0
    %680 = vmatprep.mubr.bf16.mxu0 0
    %681 = vmatmul.mubr.bf16.gmra.mrb[0].mxu0 %v646
    %v682 = vpop.f32.mrb[0].mxu0
    %v683 = vadd.f32 0.0, %v682
    %v684 = vpop.f32.mrb[0].mxu0
    %v685 = vpop.f32.mrb[0].mxu0
    %v686 = vpop.f32.mrb[0].mxu0
    %687 = vdwg.mxu0
    %v688 = vadd.f32 %v640, %v683
    %v689 = vmul.f32 %v688, 0.5
    %v690 = vtanh.pop %v689
    %v691 = vadd.f32 %v690, 1.0
    %v692 = vmul.f32 %v691, 0.5
    %v693 = vtanh.pop %v688
    %v694 = vmul.f32 %v692, %v638
    %696 = vrot.lane.b32.xlu0 %v693, 64
    %v697 = vpop.permute.xlu0 %696
    %v699 = vmul.f32 %v692, %v697
    %701 = vrot.lane.b32.xlu0 %v699, 32
    %v702 = vpop.permute.xlu0 %701
    %v704 = vadd.f32 %v694, %v702
    %v705 = vtanh.pop %v704
    %707 = vrot.lane.b32.xlu0 %v705, 64
    %v708 = vpop.permute.xlu0 %707
    %v710 = vmul.f32 %v692, %v708
    %s711 = sadd.s32 %s210, 5
    %v712 = vstv %s711
    %vm713 = vcmp.gt.s32.totalorder %v209, %v712
    %v714 = vsel %vm713, 1, 0
    %715 = vset.pattern.permute.xlu0 0
    %716 = vperm.xlu0 %715, %v714
    %v717 = vpop.permute.xlu0 %716
    %vm718 = vcmp.eq.s32.totalorder %v717, 1
    %v719 = vsel %vm718, %v710, %v637
    %v720 = vsel %vm718, %v704, %v638
    %s721 = scalar_lea.vmem [#allocation4], 48
    %v722 = vld [vmem:[%s721] sm:$0xff]
    %v723 = vpack.c.bf16 %v719, %v719
    %725 = vrot.lane.b32.xlu0 %v723, 32
    %v726 = vpop.permute.xlu0 %725
    %v728 = vsel %vm227, %v726, 0
    %730 = vmatprep.subr.bf16.mxu0 0
    %731 = vmatpush1.bf16.msra.mxu0 %v223
    %732 = vmatprep.subr.bf16.mxu0 0
    %733 = vmatpush1.bf16.msra.mxu0 %v224
    %734 = vmatprep.subr.bf16.mxu0 0
    %735 = vmatpush1.bf16.msra.mxu0 0
    %736 = vmatprep.subr.bf16.mxu0 0
    %737 = vmatpush1.bf16.msra.mxu0 0
    %738 = vmatprep.subr.bf16.mxu0 0
    %739 = vmatpush1.bf16.msra.mxu0 0
    %740 = vmatprep.subr.bf16.mxu0 0
    %741 = vmatpush1.bf16.msra.mxu0 0
    %742 = vmatprep.subr.bf16.mxu0 0
    %743 = vmatpush1.bf16.msra.mxu0 0
    %744 = vmatprep.subr.bf16.mxu0 0
    %745 = vmatpush1.bf16.msra.mxu0 0
    %746 = vmatprep.subr.bf16.mxu0 0
    %747 = vmatpush1.bf16.msra.mxu0 0
    %748 = vmatprep.subr.bf16.mxu0 0
    %749 = vmatpush1.bf16.msra.mxu0 0
    %750 = vmatprep.subr.bf16.mxu0 0
    %751 = vmatpush1.bf16.msra.mxu0 0
    %752 = vmatprep.subr.bf16.mxu0 0
    %753 = vmatpush1.bf16.msra.mxu0 0
    %754 = vmatprep.subr.bf16.mxu0 0
    %755 = vmatpush1.bf16.msra.mxu0 0
    %756 = vmatprep.subr.bf16.mxu0 0
    %757 = vmatpush1.bf16.msra.mxu0 0
    %758 = vmatprep.subr.bf16.mxu0 0
    %759 = vmatpush1.bf16.msra.mxu0 0
    %760 = vmatprep.subr.bf16.mxu0 0
    %761 = vmatpush1.bf16.msra.mxu0 0
    %762 = vmatprep.mubr.bf16.mxu0 0
    %763 = vmatmul.mubr.bf16.gmra.mrb[0].mxu0 %v728
    %v764 = vpop.f32.mrb[0].mxu0
    %v765 = vadd.f32 0.0, %v764
    %v766 = vpop.f32.mrb[0].mxu0
    %v767 = vpop.f32.mrb[0].mxu0
    %v768 = vpop.f32.mrb[0].mxu0
    %769 = vdwg.mxu0
    %v770 = vadd.f32 %v722, %v765
    %v771 = vmul.f32 %v770, 0.5
    %v772 = vtanh.pop %v771
    %v773 = vadd.f32 %v772, 1.0
    %v774 = vmul.f32 %v773, 0.5
    %v775 = vtanh.pop %v770
    %v776 = vmul.f32 %v774, %v720
    %778 = vrot.lane.b32.xlu0 %v775, 64
    %v779 = vpop.permute.xlu0 %778
    %v781 = vmul.f32 %v774, %v779
    %783 = vrot.lane.b32.xlu0 %v781, 32
    %v784 = vpop.permute.xlu0 %783
    %v786 = vadd.f32 %v776, %v784
    %v787 = vtanh.pop %v786
    %789 = vrot.lane.b32.xlu0 %v787, 64
    %v790 = vpop.permute.xlu0 %789
    %v792 = vmul.f32 %v774, %v790
    %s793 = sadd.s32 %s210, 6
    %v794 = vstv %s793
    %vm795 = vcmp.gt.s32.totalorder %v209, %v794
    %v796 = vsel %vm795, 1, 0
    %797 = vset.pattern.permute.xlu0 0
    %798 = vperm.xlu0 %797, %v796
    %v799 = vpop.permute.xlu0 %798
    %vm800 = vcmp.eq.s32.totalorder %v799, 1
    %v801 = vsel %vm800, %v792, %v719
    %v802 = vsel %vm800, %v786, %v720
    %s803 = scalar_lea.vmem [#allocation4], 56
    %v804 = vld [vmem:[%s803] sm:$0xff]
    %v805 = vpack.c.bf16 %v801, %v801
    %807 = vrot.lane.b32.xlu0 %v805, 32
    %v808 = vpop.permute.xlu0 %807
    %v810 = vsel %vm227, %v808, 0
    %812 = vmatprep.subr.bf16.mxu0 0
    %813 = vmatpush1.bf16.msra.mxu0 %v223
    %814 = vmatprep.subr.bf16.mxu0 0
    %815 = vmatpush1.bf16.msra.mxu0 %v224
    %816 = vmatprep.subr.bf16.mxu0 0
    %817 = vmatpush1.bf16.msra.mxu0 0
    %818 = vmatprep.subr.bf16.mxu0 0
    %819 = vmatpush1.bf16.msra.mxu0 0
    %820 = vmatprep.subr.bf16.mxu0 0
    %821 = vmatpush1.bf16.msra.mxu0 0
    %822 = vmatprep.subr.bf16.mxu0 0
    %823 = vmatpush1.bf16.msra.mxu0 0
    %824 = vmatprep.subr.bf16.mxu0 0
    %825 = vmatpush1.bf16.msra.mxu0 0
    %826 = vmatprep.subr.bf16.mxu0 0
    %827 = vmatpush1.bf16.msra.mxu0 0
    %828 = vmatprep.subr.bf16.mxu0 0
    %829 = vmatpush1.bf16.msra.mxu0 0
    %830 = vmatprep.subr.bf16.mxu0 0
    %831 = vmatpush1.bf16.msra.mxu0 0
    %832 = vmatprep.subr.bf16.mxu0 0
    %833 = vmatpush1.bf16.msra.mxu0 0
    %834 = vmatprep.subr.bf16.mxu0 0
    %835 = vmatpush1.bf16.msra.mxu0 0
    %836 = vmatprep.subr.bf16.mxu0 0
    %837 = vmatpush1.bf16.msra.mxu0 0
    %838 = vmatprep.subr.bf16.mxu0 0
    %839 = vmatpush1.bf16.msra.mxu0 0
    %840 = vmatprep.subr.bf16.mxu0 0
    %841 = vmatpush1.bf16.msra.mxu0 0
    %842 = vmatprep.subr.bf16.mxu0 0
    %843 = vmatpush1.bf16.msra.mxu0 0
    %844 = vmatprep.mubr.bf16.mxu0 0
    %845 = vmatmul.mubr.bf16.gmra.mrb[0].mxu0 %v810
    %v846 = vpop.f32.mrb[0].mxu0
    %v847 = vadd.f32 0.0, %v846
    %v848 = vpop.f32.mrb[0].mxu0
    %v849 = vpop.f32.mrb[0].mxu0
    %v850 = vpop.f32.mrb[0].mxu0
    %851 = vdwg.mxu0
    %v852 = vadd.f32 %v804, %v847
    %v853 = vmul.f32 %v852, 0.5
    %v854 = vtanh.pop %v853
    %v855 = vadd.f32 %v854, 1.0
    %v856 = vmul.f32 %v855, 0.5
    %v857 = vtanh.pop %v852
    %v858 = vmul.f32 %v856, %v802
    %860 = vrot.lane.b32.xlu0 %v857, 64
    %v861 = vpop.permute.xlu0 %860
    %v863 = vmul.f32 %v856, %v861
    %865 = vrot.lane.b32.xlu0 %v863, 32
    %v866 = vpop.permute.xlu0 %865
    %v868 = vadd.f32 %v858, %v866
    %v869 = vtanh.pop %v868
    %871 = vrot.lane.b32.xlu0 %v869, 64
    %v872 = vpop.permute.xlu0 %871
    %v874 = vmul.f32 %v856, %v872
    %s875 = sadd.s32 %s210, 7
    %v876 = vstv %s875
    %vm877 = vcmp.gt.s32.totalorder %v209, %v876
    %v878 = vsel %vm877, 1, 0
    %879 = vset.pattern.permute.xlu0 0
    %880 = vperm.xlu0 %879, %v878
    %v881 = vpop.permute.xlu0 %880
    %vm882 = vcmp.eq.s32.totalorder %v881, 1
    %v883 = vsel %vm882, %v874, %v801
    %v884 = vsel %vm882, %v868, %v802
    %886 = vrot.lane.b32.xlu0 %v883, 32
    %v887 = vpop.permute.xlu0 %886
    %889 = vst.msk [vmem:[#allocation2] sm:$0xff] %vm227, %v887
    %891 = vrot.lane.b32.xlu0 %v884, 96
    %v892 = vpop.permute.xlu0 %891
    %894 = vst.msk [vmem:[#allocation3] sm:$0xff] %vm227, %v892
    // Predicated region
    $region46: #{tpu_custom_call.1} parent=1 // pred_check
      %p895 = pneg %p69
    $region47: #{tpu_custom_call.1} parent=1 // pred_check_branch
      %897 = sbr.rel (%p895) target = $region49
    $region48: #{tpu_custom_call.1} parent=1 // pred_region
      %v898 = vld [vmem:[#allocation10] sm:$0xff]
      %v899 = vld [vmem:[#allocation10 + $0x8] sm:$0xff]
      %v900 = vld [vmem:[#allocation10 + $0x10] sm:$0xff]
      %v901 = vld [vmem:[#allocation10 + $0x18] sm:$0xff]
      %v902 = vld [vmem:[%s6] sm:$0x1]
      %v904 = vlaneseq
      %v905 = vshrl.u32 %v904, 7
      %v906 = vsub.s32 0, %v905
      %v907 = vrot.slane %v902, %v906
      %v909 = vsel %vm227, %v887, 0
      %911 = vmatprep.subr.mxu0 0.0
      %912 = vmatpush1.msra.mxu0 %v898
      %913 = vmatprep.subr.mxu0 0.0
      %914 = vmatpush1.msra.mxu0 %v899
      %915 = vmatprep.subr.mxu0 0.0
      %916 = vmatpush1.msra.mxu0 %v900
      %917 = vmatprep.subr.mxu0 0.0
      %918 = vmatpush1.msra.mxu0 %v901
      %919 = vmatprep.subr.mxu0 0.0
      %920 = vmatpush1.msra.mxu0 0.0
      %921 = vmatprep.subr.mxu0 0.0
      %922 = vmatpush1.msra.mxu0 0.0
      %923 = vmatprep.subr.mxu0 0.0
      %924 = vmatpush1.msra.mxu0 0.0
      %925 = vmatprep.subr.mxu0 0.0
      %926 = vmatpush1.msra.mxu0 0.0
      %927 = vmatprep.subr.mxu0 0.0
      %928 = vmatpush1.msra.mxu0 0.0
      %929 = vmatprep.subr.mxu0 0.0
      %930 = vmatpush1.msra.mxu0 0.0
      %931 = vmatprep.subr.mxu0 0.0
      %932 = vmatpush1.msra.mxu0 0.0
      %933 = vmatprep.subr.mxu0 0.0
      %934 = vmatpush1.msra.mxu0 0.0
      %935 = vmatprep.subr.mxu0 0.0
      %936 = vmatpush1.msra.mxu0 0.0
      %937 = vmatprep.subr.mxu0 0.0
      %938 = vmatpush1.msra.mxu0 0.0
      %939 = vmatprep.subr.mxu0 0.0
      %940 = vmatpush1.msra.mxu0 0.0
      %941 = vmatprep.subr.mxu0 0.0
      %942 = vmatpush1.msra.mxu0 0.0
      %943 = vmatprep.subr.mxu0 0.0
      %944 = vmatpush1.msra.mxu0 0.0
      %945 = vmatprep.subr.mxu0 0.0
      %946 = vmatpush1.msra.mxu0 0.0
      %947 = vmatprep.subr.mxu0 0.0
      %948 = vmatpush1.msra.mxu0 0.0
      %949 = vmatprep.subr.mxu0 0.0
      %950 = vmatpush1.msra.mxu0 0.0
      %951 = vmatprep.subr.mxu0 0.0
      %952 = vmatpush1.msra.mxu0 0.0
      %953 = vmatprep.subr.mxu0 0.0
      %954 = vmatpush1.msra.mxu0 0.0
      %955 = vmatprep.subr.mxu0 0.0
      %956 = vmatpush1.msra.mxu0 0.0
      %957 = vmatprep.subr.mxu0 0.0
      %958 = vmatpush1.msra.mxu0 0.0
      %959 = vmatprep.subr.mxu0 0.0
      %960 = vmatpush1.msra.mxu0 0.0
      %961 = vmatprep.subr.mxu0 0.0
      %962 = vmatpush1.msra.mxu0 0.0
      %963 = vmatprep.subr.mxu0 0.0
      %964 = vmatpush1.msra.mxu0 0.0
      %965 = vmatprep.subr.mxu0 0.0
      %966 = vmatpush1.msra.mxu0 0.0
      %967 = vmatprep.subr.mxu0 0.0
      %968 = vmatpush1.msra.mxu0 0.0
      %969 = vmatprep.subr.mxu0 0.0
      %970 = vmatpush1.msra.mxu0 0.0
      %971 = vmatprep.subr.mxu0 0.0
      %972 = vmatpush1.msra.mxu0 0.0
      %973 = vmatprep.subr.mxu0 0.0
      %974 = vmatpush1.msra.mxu0 0.0
      %975 = vmatprep.mubr.f32.mxu0 0.0
      %976 = vmatmul.mubr.f32.gmra.mrb[0].mxu0 %v909
      %v977 = vpop.f32.mrb[0].mxu0
      %v978 = vadd.f32 %v907, %v977
      %v979 = vpop.f32.mrb[0].mxu0
      %980 = vdwg.mxu0
      %v981 = vxor.u32 %v978, 2147483648
      %v982 = vmul.f32 %v981, 1.442695
      %v983 = vpow.pop %v982
      %v984 = vadd.f32 %v983, 1.0
      %v985 = vrcp.pop %v984
      %v986 = vmul.f32 1.0, %v985
      %987 = vst [vmem:[#allocation11] sm:$0xff] %v986
    $region49: #{tpu_custom_call.1} parent=1 // pred_fallthru
      _
    // Predicated region
    $region50: #{tpu_custom_call.1} parent=1 // pred_check
      _
    $region51: #{tpu_custom_call.1} parent=1 // pred_check_branch
      %989 = sbr.rel (0) target = $region53
    $region52: #{tpu_custom_call.1} parent=1 // pred_region
      %s991 = ssub.s32 128, 128
      %992 = vsyncadd [#allocation7], %s991
      %s994 = sshll.u32 [#allocation11], 4
      %s995 = int_to_ptr.vmem [resolvable:$true] %s994
      %997 = dma.vmem_to_hbm [thread:$0]  %s995, 128, %s7, [#allocation7]
    $region53: #{tpu_custom_call.1} parent=1 // pred_fallthru
      _
    // Predicated region
    $region54: #{tpu_custom_call.1} parent=1 // pred_check
      _
    $region55: #{tpu_custom_call.1} parent=1 // pred_check_branch
      %999 = sbr.rel (0) target = $region57
    $region56: #{tpu_custom_call.1} parent=1 // pred_region
      %1000 = dma.done [#allocation7], 128
    $region57: #{tpu_custom_call.1} parent=1 // pred_fallthru
      _
    %1001 = vsyncpa [#allocation6], 1
    %1002 = vsyncpa [#allocation9], 1
    %1003 = vsyncpa [#allocation7], 1

</llo_original>
